<compile_context>
chip_gen: v7x
topology: tpu7x:2x2x1
jax: 0.10.0
libtpu: 0.0.40
codegen_flags: <defaults>
</compile_context>

<pallas_src>
import functools

import jax
import jax.numpy as jnp
from jax.experimental import pallas as pl
from jax.experimental.pallas import tpu as pltpu


# ---- SMEM scalar-parameter layout (conv biases + flattened conv kernels) ----
_OFF_BC1 = 0                 # 1x1-conv bias
_OFF_B3 = 1
_OFF_B5 = 2
_OFF_B7 = 3
_OFF_W3 = 4                  # 3x3 kernel, row-major (9)
_OFF_W5 = _OFF_W3 + 9        # 5x5 kernel (25)
_OFF_W7 = _OFF_W5 + 25       # 7x7 kernel (49)
_N_SCAL = _OFF_W7 + 49       # = 87 scalars


def _pad_lanes(width):
    # lane-aligned zero pad around the flattened x1 row; must cover the largest
    # flat shift |3*W + 3| and stay a multiple of 128 so the concat is aligned.
    return max(128, ((3 * width + 3 + 127) // 128) * 128)


def att_kernel(x_ref, cw_ref, b1_ref, col_ref, sc_ref, o_ref,
               *, hd, height, width, tb):
    # x_ref:   (TB, C, HW)   current batch tile (native dtype)
    # cw_ref:  (C, 2*Hd+2)   packed per-channel params: [W1.T | W2 | b2 | w_1x1]
    # b1_ref:  (1, Hd)       senet first-FC bias
    # col_ref: (1, HW)       int32 column index of each flattened position
    # sc_ref:  (87,) SMEM    conv biases + 3x3/5x5/7x7 tap weights (f32 scalars)
    hw = height * width
    pad = _pad_lanes(width)

    # ---- grid-step invariants (hoisted out of the per-sample loop) ----
    col = col_ref[...]                                            # (1, HW) int32
    colmask = {dx: (col + dx >= 0) & (col + dx < width)
               for dx in range(-3, 4)}
    zpad = jnp.zeros((1, pad), jnp.float32)

    w1t = cw_ref[:, 0:hd]                                         # (C, Hd) = W1.T
    w2 = cw_ref[:, hd:2 * hd]                                     # (C, Hd) = W2
    b2c = cw_ref[:, 2 * hd:2 * hd + 1]                            # (C, 1)
    wc1 = cw_ref[:, 2 * hd + 1:2 * hd + 2]                        # (C, 1) 1x1-conv w

    for t in range(tb):
        xt = x_ref[t]                                             # (C, HW)

        # ---- senet: GAP (f32 accumulation) + two tiny FCs on VPU/XLU ----
        mean = jnp.mean(xt, axis=1, keepdims=True, dtype=jnp.float32)      # (C,1)
        hvec = jnp.sum(mean * w1t, axis=0, keepdims=True) + b1_ref[...]    # (1,Hd)
        hvec = jnp.maximum(hvec, 0.0)
        e = jax.nn.sigmoid(jnp.sum(hvec * w2, axis=1, keepdims=True) + b2c)  # (C,1)

        # ---- xcon2: 1x1 conv C -> 1 (sublane reduction), f32 ----
        x1 = jnp.sum(xt * wc1, axis=0, keepdims=True) + sc_ref[_OFF_BC1]   # (1,HW)

        # ---- shared shifted+masked taps for the 3x3 / 5x5 / 7x7 convs ----
        # out[r,c] += w[i,j] * x1[r+dy, c+dx]; in flat indexing that is a static
        # shift by dy*W+dx of the zero-padded row, masked on column validity
        # (the zero pad already covers out-of-range rows once columns are valid).
        x1p = jnp.concatenate([zpad, x1, zpad], axis=1)           # (1, HW + 2*pad)
        taps = {}
        for dy in range(-3, 4):
            for dx in range(-3, 4):
                s0 = dy * width + dx
                shifted = x1p[:, pad + s0: pad + s0 + hw]         # (1, HW)
                taps[(dy, dx)] = jnp.where(colmask[dx], shifted, 0.0)

        def conv_same(k, w_off, b_off):
            r = k // 2
            acc = jnp.zeros((1, hw), jnp.float32)
            for i in range(k):
                for j in range(k):
                    acc = acc + sc_ref[w_off + i * k + j] * taps[(i - r, j - r)]
            return acc + sc_ref[b_off]

        attn = jax.nn.sigmoid(conv_same(3, _OFF_W3, _OFF_B3)
                              + conv_same(5, _OFF_W5, _OFF_B5)
                              + conv_same(7, _OFF_W7, _OFF_B7))   # (1, HW) f32

        # ---- out = (sigmoid(convs) * x) * (x * e) (matches torch.mul order) ----
        # Cast the two small gating factors down to x's dtype so the big (C,HW)
        # multiplies run in the native width (exact for the f32 test; the
        # bf16-friendly path for v6e/v7x — on v5e f32 inputs keep everything f32).
        attn_d = attn.astype(xt.dtype)
        e_d = e.astype(xt.dtype)
        o_ref[t] = ((attn_d * xt) * (xt * e_d)).astype(o_ref.dtype)


def _pick_tb(n, c, hw, itemsize):
    """Largest per-step batch tile that divides N, keeps >=2 grid steps when
    N >= 2 (so both v7x TensorCores get work) and keeps the double-buffered
    input+output tiles well inside the requested VMEM budget."""
    budget = 16 * 1024 * 1024
    best = 1
    for tb in range(1, n + 1):
        if n % tb:
            continue
        if n >= 2 and n // tb < 2:
            continue
        if 4 * tb * c * hw * itemsize > budget:   # 2 double-buffered (in + out)
            continue
        best = tb
    return best


def att_forward(x, params):
    """x: (N, C, H, W); params = (w1, b1, w2, b2, wc1, bc1, w3, b3, w5, b5, w7, b7)."""
    w1, b1, w2, b2, wc1, bc1, w3, b3, w5, b5, w7, b7 = params
    N, C, H, W = x.shape
    Hd = w1.shape[0]
    HW = H * W
    f32 = jnp.float32

    x_flat = x.reshape(N, C, HW)

    # Packed per-channel params: [W1.T | W2 | b2 | 1x1-conv weights]  -> (C, 2*Hd+2)
    cw = jnp.concatenate(
        [w1.T.astype(f32), w2.astype(f32),
         b2.reshape(C, 1).astype(f32), wc1.reshape(C, 1).astype(f32)], axis=1)
    b1row = b1.reshape(1, Hd).astype(f32)
    colmap = (jnp.arange(HW, dtype=jnp.int32) % W).reshape(1, HW)
    scal = jnp.concatenate([
        bc1.reshape(1).astype(f32),
        b3.reshape(1).astype(f32),
        b5.reshape(1).astype(f32),
        b7.reshape(1).astype(f32),
        w3.reshape(-1).astype(f32),
        w5.reshape(-1).astype(f32),
        w7.reshape(-1).astype(f32)])
    assert scal.shape[0] == _N_SCAL

    TB = _pick_tb(N, C, HW, x.dtype.itemsize)
    grid = (N // TB,)

    kernel = functools.partial(att_kernel, hd=Hd, height=H, width=W, tb=TB)

    out_flat = pl.pallas_call(
        kernel,
        out_shape=jax.ShapeDtypeStruct((N, C, HW), x.dtype),
        grid_spec=pltpu.PrefetchScalarGridSpec(
            num_scalar_prefetch=0,
            grid=grid,
            in_specs=[
                pl.BlockSpec((TB, C, HW), lambda n: (n, 0, 0)),
                pl.BlockSpec((C, 2 * Hd + 2), lambda n: (0, 0)),   # constant -> one DMA
                pl.BlockSpec((1, Hd), lambda n: (0, 0)),
                pl.BlockSpec((1, HW), lambda n: (0, 0)),
                pl.BlockSpec(memory_space=pltpu.MemorySpace.SMEM),
            ],
            out_specs=pl.BlockSpec((TB, C, HW), lambda n: (n, 0, 0)),
        ),
        compiler_params=pltpu.CompilerParams(
            dimension_semantics=("parallel",),
            vmem_limit_bytes=32 * 1024 * 1024,
        ),
    )(x_flat, cw, b1row, colmap, scal)

    return out_flat.reshape(N, C, H, W)


def att_reference(x, params):
    """Pure-JAX reference matching the PyTorch ATT module (f32 precision)."""
    w1, b1, w2, b2, wc1, bc1, w3, b3, w5, b5, w7, b7 = params
    n, c, h, w = x.shape
    hi = jax.lax.Precision.HIGHEST

    glb = jnp.mean(x, axis=(2, 3))
    hid = jnp.maximum(jnp.dot(glb, w1.T, precision=hi) + b1, 0.0)
    e = jax.nn.sigmoid(jnp.dot(hid, w2.T, precision=hi) + b2)
    sent = x * e[:, :, None, None]

    def conv(inp, wgt, bias, padd):
        out = jax.lax.conv_general_dilated(
            inp, wgt, window_strides=(1, 1),
            padding=((padd, padd), (padd, padd)),
            dimension_numbers=("NCHW", "OIHW", "NCHW"),
            precision=hi)
        return out + bias.reshape(1, -1, 1, 1)

    x1 = conv(x, wc1.reshape(1, c, 1, 1), bc1, 0)
    x3 = conv(x1, w3.reshape(1, 1, 3, 3), b3, 1)
    x5 = conv(x1, w5.reshape(1, 1, 5, 5), b5, 2)
    x7 = conv(x1, w7.reshape(1, 1, 7, 7), b7, 3)
    softm = jax.nn.sigmoid(x3 + x5 + x7)
    return (softm * x) * sent


if __name__ == "__main__":
    # in_channels must be >= 16 so that C // 16 >= 1
    N, C, H, W = 2, 32, 16, 16
    Hd = C // 16
    f32 = jnp.float32

    key = jax.random.PRNGKey(0)
    ks = jax.random.split(key, 13)
    x = jax.random.normal(ks[0], (N, C, H, W), dtype=f32)
    # torch parameter shapes: Linear W1 (Hd, C) / W2 (C, Hd); Conv2d weights squeezed
    w1 = jax.random.normal(ks[1], (Hd, C), f32) * 0.1
    b1 = jax.random.normal(ks[2], (Hd,), f32) * 0.1
    w2 = jax.random.normal(ks[3], (C, Hd), f32) * 0.1
    b2 = jax.random.normal(ks[4], (C,), f32) * 0.1
    wc1 = jax.random.normal(ks[5], (C,), f32) * 0.1          # xcon2 weight (1,C,1,1)
    bc1 = jax.random.normal(ks[6], (1,), f32) * 0.1
    w3 = jax.random.normal(ks[7], (3, 3), f32) * 0.1         # xcon3 weight (1,1,3,3)
    b3 = jax.random.normal(ks[8], (1,), f32) * 0.1
    w5 = jax.random.normal(ks[9], (5, 5), f32) * 0.1         # xcon5 weight (1,1,5,5)
    b5 = jax.random.normal(ks[10], (1,), f32) * 0.1
    w7 = jax.random.normal(ks[11], (7, 7), f32) * 0.1        # xcon7 weight (1,1,7,7)
    b7 = jax.random.normal(ks[12], (1,), f32) * 0.1

    params = (w1, b1, w2, b2, wc1, bc1, w3, b3, w5, b5, w7, b7)

    out = att_forward(x, params)
    out = jax.block_until_ready(out)

    ref = att_reference(x, params)
    assert out.shape == (N, C, H, W)
    max_err = jnp.max(jnp.abs(out - ref))
    assert jnp.allclose(out, ref, atol=1e-4, rtol=1e-4), f"mismatch vs reference: {max_err}"

    print("KERNEL_OK")
</pallas_src>

<mosaic_0001>
module attributes {stable_mosaic.version = 11 : i64} {
  func.func @att_kernel(%arg0: i32, %arg1: memref<1x32x256xf32, #tpu.memory_space<vmem>>, %arg2: memref<32x6xf32, #tpu.memory_space<vmem>>, %arg3: memref<1x2xf32, #tpu.memory_space<vmem>>, %arg4: memref<1x256xi32, #tpu.memory_space<vmem>>, %arg5: memref<87xf32, #tpu.memory_space<smem>>, %arg6: memref<1x32x256xf32, #tpu.memory_space<vmem>>) attributes {dimension_semantics = [#tpu.dimension_semantics<parallel>], iteration_bounds = array<i64: 2>, scalar_prefetch = 0 : i64, scratch_operands = 0 : i64, tpu.core_type = #tpu.core_type<tc>, window_params = [{transform_indices = @transform_0, window_bounds = array<i64: 1, 32, 256>}, {pipeline_mode = #tpu.pipeline_mode<synchronous>, transform_indices = @transform_1, window_bounds = array<i64: 32, 6>}, {pipeline_mode = #tpu.pipeline_mode<synchronous>, transform_indices = @transform_2, window_bounds = array<i64: 1, 2>}, {pipeline_mode = #tpu.pipeline_mode<synchronous>, transform_indices = @transform_3, window_bounds = array<i64: 1, 256>}, {transform_indices = @transform_4, window_bounds = array<i64: 87>}, {transform_indices = @transform_5, window_bounds = array<i64: 1, 32, 256>}]} {
    %c0 = arith.constant 0 : index
    %c0_0 = arith.constant 0 : index
    %0 = vector.load %arg4[%c0, %c0_0] : memref<1x256xi32, #tpu.memory_space<vmem>>, vector<1x256xi32>
    %c-3_i32 = arith.constant -3 : i32
    %1 = vector.broadcast %c-3_i32 : i32 to vector<1x256xi32>
    %2 = arith.addi %0, %1 : vector<1x256xi32>
    %c0_i32 = arith.constant 0 : i32
    %3 = vector.broadcast %c0_i32 : i32 to vector<1x256xi32>
    %4 = arith.cmpi sge, %2, %3 : vector<1x256xi32>
    %c-3_i32_1 = arith.constant -3 : i32
    %5 = vector.broadcast %c-3_i32_1 : i32 to vector<1x256xi32>
    %6 = arith.addi %0, %5 : vector<1x256xi32>
    %c16_i32 = arith.constant 16 : i32
    %7 = vector.broadcast %c16_i32 : i32 to vector<1x256xi32>
    %8 = arith.cmpi slt, %6, %7 : vector<1x256xi32>
    %9 = arith.andi %4, %8 : vector<1x256xi1>
    %c-2_i32 = arith.constant -2 : i32
    %10 = vector.broadcast %c-2_i32 : i32 to vector<1x256xi32>
    %11 = arith.addi %0, %10 : vector<1x256xi32>
    %c0_i32_2 = arith.constant 0 : i32
    %12 = vector.broadcast %c0_i32_2 : i32 to vector<1x256xi32>
    %13 = arith.cmpi sge, %11, %12 : vector<1x256xi32>
    %c-2_i32_3 = arith.constant -2 : i32
    %14 = vector.broadcast %c-2_i32_3 : i32 to vector<1x256xi32>
    %15 = arith.addi %0, %14 : vector<1x256xi32>
    %c16_i32_4 = arith.constant 16 : i32
    %16 = vector.broadcast %c16_i32_4 : i32 to vector<1x256xi32>
    %17 = arith.cmpi slt, %15, %16 : vector<1x256xi32>
    %18 = arith.andi %13, %17 : vector<1x256xi1>
    %c-1_i32 = arith.constant -1 : i32
    %19 = vector.broadcast %c-1_i32 : i32 to vector<1x256xi32>
    %20 = arith.addi %0, %19 : vector<1x256xi32>
    %c0_i32_5 = arith.constant 0 : i32
    %21 = vector.broadcast %c0_i32_5 : i32 to vector<1x256xi32>
    %22 = arith.cmpi sge, %20, %21 : vector<1x256xi32>
    %c-1_i32_6 = arith.constant -1 : i32
    %23 = vector.broadcast %c-1_i32_6 : i32 to vector<1x256xi32>
    %24 = arith.addi %0, %23 : vector<1x256xi32>
    %c16_i32_7 = arith.constant 16 : i32
    %25 = vector.broadcast %c16_i32_7 : i32 to vector<1x256xi32>
    %26 = arith.cmpi slt, %24, %25 : vector<1x256xi32>
    %27 = arith.andi %22, %26 : vector<1x256xi1>
    %c0_i32_8 = arith.constant 0 : i32
    %28 = vector.broadcast %c0_i32_8 : i32 to vector<1x256xi32>
    %29 = arith.addi %0, %28 : vector<1x256xi32>
    %c0_i32_9 = arith.constant 0 : i32
    %30 = vector.broadcast %c0_i32_9 : i32 to vector<1x256xi32>
    %31 = arith.cmpi sge, %29, %30 : vector<1x256xi32>
    %c0_i32_10 = arith.constant 0 : i32
    %32 = vector.broadcast %c0_i32_10 : i32 to vector<1x256xi32>
    %33 = arith.addi %0, %32 : vector<1x256xi32>
    %c16_i32_11 = arith.constant 16 : i32
    %34 = vector.broadcast %c16_i32_11 : i32 to vector<1x256xi32>
    %35 = arith.cmpi slt, %33, %34 : vector<1x256xi32>
    %36 = arith.andi %31, %35 : vector<1x256xi1>
    %c1_i32 = arith.constant 1 : i32
    %37 = vector.broadcast %c1_i32 : i32 to vector<1x256xi32>
    %38 = arith.addi %0, %37 : vector<1x256xi32>
    %c0_i32_12 = arith.constant 0 : i32
    %39 = vector.broadcast %c0_i32_12 : i32 to vector<1x256xi32>
    %40 = arith.cmpi sge, %38, %39 : vector<1x256xi32>
    %c1_i32_13 = arith.constant 1 : i32
    %41 = vector.broadcast %c1_i32_13 : i32 to vector<1x256xi32>
    %42 = arith.addi %0, %41 : vector<1x256xi32>
    %c16_i32_14 = arith.constant 16 : i32
    %43 = vector.broadcast %c16_i32_14 : i32 to vector<1x256xi32>
    %44 = arith.cmpi slt, %42, %43 : vector<1x256xi32>
    %45 = arith.andi %40, %44 : vector<1x256xi1>
    %c2_i32 = arith.constant 2 : i32
    %46 = vector.broadcast %c2_i32 : i32 to vector<1x256xi32>
    %47 = arith.addi %0, %46 : vector<1x256xi32>
    %c0_i32_15 = arith.constant 0 : i32
    %48 = vector.broadcast %c0_i32_15 : i32 to vector<1x256xi32>
    %49 = arith.cmpi sge, %47, %48 : vector<1x256xi32>
    %c2_i32_16 = arith.constant 2 : i32
    %50 = vector.broadcast %c2_i32_16 : i32 to vector<1x256xi32>
    %51 = arith.addi %0, %50 : vector<1x256xi32>
    %c16_i32_17 = arith.constant 16 : i32
    %52 = vector.broadcast %c16_i32_17 : i32 to vector<1x256xi32>
    %53 = arith.cmpi slt, %51, %52 : vector<1x256xi32>
    %54 = arith.andi %49, %53 : vector<1x256xi1>
    %c3_i32 = arith.constant 3 : i32
    %55 = vector.broadcast %c3_i32 : i32 to vector<1x256xi32>
    %56 = arith.addi %0, %55 : vector<1x256xi32>
    %c0_i32_18 = arith.constant 0 : i32
    %57 = vector.broadcast %c0_i32_18 : i32 to vector<1x256xi32>
    %58 = arith.cmpi sge, %56, %57 : vector<1x256xi32>
    %c3_i32_19 = arith.constant 3 : i32
    %59 = vector.broadcast %c3_i32_19 : i32 to vector<1x256xi32>
    %60 = arith.addi %0, %59 : vector<1x256xi32>
    %c16_i32_20 = arith.constant 16 : i32
    %61 = vector.broadcast %c16_i32_20 : i32 to vector<1x256xi32>
    %62 = arith.cmpi slt, %60, %61 : vector<1x256xi32>
    %63 = arith.andi %58, %62 : vector<1x256xi1>
    %cst = arith.constant 0.000000e+00 : f32
    %64 = vector.broadcast %cst : f32 to vector<1x128xf32>
    %c0_21 = arith.constant 0 : index
    %c0_22 = arith.constant 0 : index
    %65 = vector.load %arg2[%c0_21, %c0_22] : memref<32x6xf32, #tpu.memory_space<vmem>>, vector<32x2xf32>
    %c0_23 = arith.constant 0 : index
    %c2 = arith.constant 2 : index
    %66 = vector.load %arg2[%c0_23, %c2] : memref<32x6xf32, #tpu.memory_space<vmem>>, vector<32x2xf32>
    %c0_24 = arith.constant 0 : index
    %c4 = arith.constant 4 : index
    %67 = vector.load %arg2[%c0_24, %c4] : memref<32x6xf32, #tpu.memory_space<vmem>>, vector<32x1xf32>
    %c0_25 = arith.constant 0 : index
    %c5 = arith.constant 5 : index
    %68 = vector.load %arg2[%c0_25, %c5] : memref<32x6xf32, #tpu.memory_space<vmem>>, vector<32x1xf32>
    %c0_26 = arith.constant 0 : index
    %c0_27 = arith.constant 0 : index
    %c0_28 = arith.constant 0 : index
    %69 = vector.load %arg1[%c0_26, %c0_27, %c0_28] : memref<1x32x256xf32, #tpu.memory_space<vmem>>, vector<1x32x256xf32>
    %70 = vector.shape_cast %69 : vector<1x32x256xf32> to vector<32x256xf32>
    %cst_29 = arith.constant dense<0.000000e+00> : vector<32xf32>
    %71 = vector.multi_reduction <add>, %70, %cst_29 [1] : vector<32x256xf32> to vector<32xf32>
    %72 = vector.shape_cast %71 : vector<32xf32> to vector<32x1xf32>
    %cst_30 = arith.constant 2.560000e+02 : f32
    %73 = vector.broadcast %cst_30 : f32 to vector<32x1xf32>
    %74 = arith.divf %72, %73 : vector<32x1xf32>
    %75 = vector.broadcast %74 : vector<32x1xf32> to vector<32x2xf32>
    %76 = arith.mulf %75, %65 : vector<32x2xf32>
    %cst_31 = arith.constant dense<0.000000e+00> : vector<2xf32>
    %77 = vector.multi_reduction <add>, %76, %cst_31 [0] : vector<32x2xf32> to vector<2xf32>
    %78 = vector.shape_cast %77 : vector<2xf32> to vector<1x2xf32>
    %c0_32 = arith.constant 0 : index
    %c0_33 = arith.constant 0 : index
    %79 = vector.load %arg3[%c0_32, %c0_33] : memref<1x2xf32, #tpu.memory_space<vmem>>, vector<1x2xf32>
    %80 = arith.addf %78, %79 : vector<1x2xf32>
    %cst_34 = arith.constant 0.000000e+00 : f32
    %81 = vector.broadcast %cst_34 : f32 to vector<1x2xf32>
    %82 = arith.maximumf %80, %81 : vector<1x2xf32>
    %83 = vector.broadcast %82 : vector<1x2xf32> to vector<32x2xf32>
    %84 = arith.mulf %83, %66 : vector<32x2xf32>
    %cst_35 = arith.constant dense<0.000000e+00> : vector<32xf32>
    %85 = vector.multi_reduction <add>, %84, %cst_35 [1] : vector<32x2xf32> to vector<32xf32>
    %86 = vector.shape_cast %85 : vector<32xf32> to vector<32x1xf32>
    %87 = arith.addf %86, %67 : vector<32x1xf32>
    %88 = arith.negf %87 : vector<32x1xf32>
    %89 = math.exp %88 : vector<32x1xf32>
    %cst_36 = arith.constant 1.000000e+00 : f32
    %90 = vector.broadcast %cst_36 : f32 to vector<32x1xf32>
    %91 = arith.addf %90, %89 : vector<32x1xf32>
    %92 = arith.divf %90, %91 : vector<32x1xf32>
    %93 = vector.broadcast %68 : vector<32x1xf32> to vector<32x256xf32>
    %94 = arith.mulf %70, %93 : vector<32x256xf32>
    %cst_37 = arith.constant dense<0.000000e+00> : vector<256xf32>
    %95 = vector.multi_reduction <add>, %94, %cst_37 [0] : vector<32x256xf32> to vector<256xf32>
    %96 = vector.shape_cast %95 : vector<256xf32> to vector<1x256xf32>
    %c0_38 = arith.constant 0 : index
    %97 = memref.load %arg5[%c0_38] : memref<87xf32, #tpu.memory_space<smem>>
    %98 = vector.broadcast %97 : f32 to vector<1x256xf32>
    %99 = arith.addf %96, %98 : vector<1x256xf32>
    %100 = tpu.concatenate %64, %99, %64 in 1 : vector<1x128xf32>, vector<1x256xf32>, vector<1x128xf32> -> vector<1x512xf32>
    %101 = vector.extract_strided_slice %100 {offsets = [0, 77], sizes = [1, 256], strides = [1, 1]} : vector<1x512xf32> to vector<1x256xf32>
    %cst_39 = arith.constant 0.000000e+00 : f32
    %102 = vector.broadcast %cst_39 : f32 to vector<1x256xf32>
    %103 = arith.select %9, %101, %102 : vector<1x256xi1>, vector<1x256xf32>
    %104 = vector.extract_strided_slice %100 {offsets = [0, 78], sizes = [1, 256], strides = [1, 1]} : vector<1x512xf32> to vector<1x256xf32>
    %cst_40 = arith.constant 0.000000e+00 : f32
    %105 = vector.broadcast %cst_40 : f32 to vector<1x256xf32>
    %106 = arith.select %18, %104, %105 : vector<1x256xi1>, vector<1x256xf32>
    %107 = vector.extract_strided_slice %100 {offsets = [0, 79], sizes = [1, 256], strides = [1, 1]} : vector<1x512xf32> to vector<1x256xf32>
    %cst_41 = arith.constant 0.000000e+00 : f32
    %108 = vector.broadcast %cst_41 : f32 to vector<1x256xf32>
    %109 = arith.select %27, %107, %108 : vector<1x256xi1>, vector<1x256xf32>
    %110 = vector.extract_strided_slice %100 {offsets = [0, 80], sizes = [1, 256], strides = [1, 1]} : vector<1x512xf32> to vector<1x256xf32>
    %cst_42 = arith.constant 0.000000e+00 : f32
    %111 = vector.broadcast %cst_42 : f32 to vector<1x256xf32>
    %112 = arith.select %36, %110, %111 : vector<1x256xi1>, vector<1x256xf32>
    %113 = vector.extract_strided_slice %100 {offsets = [0, 81], sizes = [1, 256], strides = [1, 1]} : vector<1x512xf32> to vector<1x256xf32>
    %cst_43 = arith.constant 0.000000e+00 : f32
    %114 = vector.broadcast %cst_43 : f32 to vector<1x256xf32>
    %115 = arith.select %45, %113, %114 : vector<1x256xi1>, vector<1x256xf32>
    %116 = vector.extract_strided_slice %100 {offsets = [0, 82], sizes = [1, 256], strides = [1, 1]} : vector<1x512xf32> to vector<1x256xf32>
    %cst_44 = arith.constant 0.000000e+00 : f32
    %117 = vector.broadcast %cst_44 : f32 to vector<1x256xf32>
    %118 = arith.select %54, %116, %117 : vector<1x256xi1>, vector<1x256xf32>
    %119 = vector.extract_strided_slice %100 {offsets = [0, 83], sizes = [1, 256], strides = [1, 1]} : vector<1x512xf32> to vector<1x256xf32>
    %cst_45 = arith.constant 0.000000e+00 : f32
    %120 = vector.broadcast %cst_45 : f32 to vector<1x256xf32>
    %121 = arith.select %63, %119, %120 : vector<1x256xi1>, vector<1x256xf32>
    %122 = vector.extract_strided_slice %100 {offsets = [0, 93], sizes = [1, 256], strides = [1, 1]} : vector<1x512xf32> to vector<1x256xf32>
    %cst_46 = arith.constant 0.000000e+00 : f32
    %123 = vector.broadcast %cst_46 : f32 to vector<1x256xf32>
    %124 = arith.select %9, %122, %123 : vector<1x256xi1>, vector<1x256xf32>
    %125 = vector.extract_strided_slice %100 {offsets = [0, 94], sizes = [1, 256], strides = [1, 1]} : vector<1x512xf32> to vector<1x256xf32>
    %cst_47 = arith.constant 0.000000e+00 : f32
    %126 = vector.broadcast %cst_47 : f32 to vector<1x256xf32>
    %127 = arith.select %18, %125, %126 : vector<1x256xi1>, vector<1x256xf32>
    %128 = vector.extract_strided_slice %100 {offsets = [0, 95], sizes = [1, 256], strides = [1, 1]} : vector<1x512xf32> to vector<1x256xf32>
    %cst_48 = arith.constant 0.000000e+00 : f32
    %129 = vector.broadcast %cst_48 : f32 to vector<1x256xf32>
    %130 = arith.select %27, %128, %129 : vector<1x256xi1>, vector<1x256xf32>
    %131 = vector.extract_strided_slice %100 {offsets = [0, 96], sizes = [1, 256], strides = [1, 1]} : vector<1x512xf32> to vector<1x256xf32>
    %cst_49 = arith.constant 0.000000e+00 : f32
    %132 = vector.broadcast %cst_49 : f32 to vector<1x256xf32>
    %133 = arith.select %36, %131, %132 : vector<1x256xi1>, vector<1x256xf32>
    %134 = vector.extract_strided_slice %100 {offsets = [0, 97], sizes = [1, 256], strides = [1, 1]} : vector<1x512xf32> to vector<1x256xf32>
    %cst_50 = arith.constant 0.000000e+00 : f32
    %135 = vector.broadcast %cst_50 : f32 to vector<1x256xf32>
    %136 = arith.select %45, %134, %135 : vector<1x256xi1>, vector<1x256xf32>
    %137 = vector.extract_strided_slice %100 {offsets = [0, 98], sizes = [1, 256], strides = [1, 1]} : vector<1x512xf32> to vector<1x256xf32>
    %cst_51 = arith.constant 0.000000e+00 : f32
    %138 = vector.broadcast %cst_51 : f32 to vector<1x256xf32>
    %139 = arith.select %54, %137, %138 : vector<1x256xi1>, vector<1x256xf32>
    %140 = vector.extract_strided_slice %100 {offsets = [0, 99], sizes = [1, 256], strides = [1, 1]} : vector<1x512xf32> to vector<1x256xf32>
    %cst_52 = arith.constant 0.000000e+00 : f32
    %141 = vector.broadcast %cst_52 : f32 to vector<1x256xf32>
    %142 = arith.select %63, %140, %141 : vector<1x256xi1>, vector<1x256xf32>
    %143 = vector.extract_strided_slice %100 {offsets = [0, 109], sizes = [1, 256], strides = [1, 1]} : vector<1x512xf32> to vector<1x256xf32>
    %cst_53 = arith.constant 0.000000e+00 : f32
    %144 = vector.broadcast %cst_53 : f32 to vector<1x256xf32>
    %145 = arith.select %9, %143, %144 : vector<1x256xi1>, vector<1x256xf32>
    %146 = vector.extract_strided_slice %100 {offsets = [0, 110], sizes = [1, 256], strides = [1, 1]} : vector<1x512xf32> to vector<1x256xf32>
    %cst_54 = arith.constant 0.000000e+00 : f32
    %147 = vector.broadcast %cst_54 : f32 to vector<1x256xf32>
    %148 = arith.select %18, %146, %147 : vector<1x256xi1>, vector<1x256xf32>
    %149 = vector.extract_strided_slice %100 {offsets = [0, 111], sizes = [1, 256], strides = [1, 1]} : vector<1x512xf32> to vector<1x256xf32>
    %cst_55 = arith.constant 0.000000e+00 : f32
    %150 = vector.broadcast %cst_55 : f32 to vector<1x256xf32>
    %151 = arith.select %27, %149, %150 : vector<1x256xi1>, vector<1x256xf32>
    %152 = vector.extract_strided_slice %100 {offsets = [0, 112], sizes = [1, 256], strides = [1, 1]} : vector<1x512xf32> to vector<1x256xf32>
    %cst_56 = arith.constant 0.000000e+00 : f32
    %153 = vector.broadcast %cst_56 : f32 to vector<1x256xf32>
    %154 = arith.select %36, %152, %153 : vector<1x256xi1>, vector<1x256xf32>
    %155 = vector.extract_strided_slice %100 {offsets = [0, 113], sizes = [1, 256], strides = [1, 1]} : vector<1x512xf32> to vector<1x256xf32>
    %cst_57 = arith.constant 0.000000e+00 : f32
    %156 = vector.broadcast %cst_57 : f32 to vector<1x256xf32>
    %157 = arith.select %45, %155, %156 : vector<1x256xi1>, vector<1x256xf32>
    %158 = vector.extract_strided_slice %100 {offsets = [0, 114], sizes = [1, 256], strides = [1, 1]} : vector<1x512xf32> to vector<1x256xf32>
    %cst_58 = arith.constant 0.000000e+00 : f32
    %159 = vector.broadcast %cst_58 : f32 to vector<1x256xf32>
    %160 = arith.select %54, %158, %159 : vector<1x256xi1>, vector<1x256xf32>
    %161 = vector.extract_strided_slice %100 {offsets = [0, 115], sizes = [1, 256], strides = [1, 1]} : vector<1x512xf32> to vector<1x256xf32>
    %cst_59 = arith.constant 0.000000e+00 : f32
    %162 = vector.broadcast %cst_59 : f32 to vector<1x256xf32>
    %163 = arith.select %63, %161, %162 : vector<1x256xi1>, vector<1x256xf32>
    %164 = vector.extract_strided_slice %100 {offsets = [0, 125], sizes = [1, 256], strides = [1, 1]} : vector<1x512xf32> to vector<1x256xf32>
    %cst_60 = arith.constant 0.000000e+00 : f32
    %165 = vector.broadcast %cst_60 : f32 to vector<1x256xf32>
    %166 = arith.select %9, %164, %165 : vector<1x256xi1>, vector<1x256xf32>
    %167 = vector.extract_strided_slice %100 {offsets = [0, 126], sizes = [1, 256], strides = [1, 1]} : vector<1x512xf32> to vector<1x256xf32>
    %cst_61 = arith.constant 0.000000e+00 : f32
    %168 = vector.broadcast %cst_61 : f32 to vector<1x256xf32>
    %169 = arith.select %18, %167, %168 : vector<1x256xi1>, vector<1x256xf32>
    %170 = vector.extract_strided_slice %100 {offsets = [0, 127], sizes = [1, 256], strides = [1, 1]} : vector<1x512xf32> to vector<1x256xf32>
    %cst_62 = arith.constant 0.000000e+00 : f32
    %171 = vector.broadcast %cst_62 : f32 to vector<1x256xf32>
    %172 = arith.select %27, %170, %171 : vector<1x256xi1>, vector<1x256xf32>
    %173 = vector.extract_strided_slice %100 {offsets = [0, 128], sizes = [1, 256], strides = [1, 1]} : vector<1x512xf32> to vector<1x256xf32>
    %cst_63 = arith.constant 0.000000e+00 : f32
    %174 = vector.broadcast %cst_63 : f32 to vector<1x256xf32>
    %175 = arith.select %36, %173, %174 : vector<1x256xi1>, vector<1x256xf32>
    %176 = vector.extract_strided_slice %100 {offsets = [0, 129], sizes = [1, 256], strides = [1, 1]} : vector<1x512xf32> to vector<1x256xf32>
    %cst_64 = arith.constant 0.000000e+00 : f32
    %177 = vector.broadcast %cst_64 : f32 to vector<1x256xf32>
    %178 = arith.select %45, %176, %177 : vector<1x256xi1>, vector<1x256xf32>
    %179 = vector.extract_strided_slice %100 {offsets = [0, 130], sizes = [1, 256], strides = [1, 1]} : vector<1x512xf32> to vector<1x256xf32>
    %cst_65 = arith.constant 0.000000e+00 : f32
    %180 = vector.broadcast %cst_65 : f32 to vector<1x256xf32>
    %181 = arith.select %54, %179, %180 : vector<1x256xi1>, vector<1x256xf32>
    %182 = vector.extract_strided_slice %100 {offsets = [0, 131], sizes = [1, 256], strides = [1, 1]} : vector<1x512xf32> to vector<1x256xf32>
    %cst_66 = arith.constant 0.000000e+00 : f32
    %183 = vector.broadcast %cst_66 : f32 to vector<1x256xf32>
    %184 = arith.select %63, %182, %183 : vector<1x256xi1>, vector<1x256xf32>
    %185 = vector.extract_strided_slice %100 {offsets = [0, 141], sizes = [1, 256], strides = [1, 1]} : vector<1x512xf32> to vector<1x256xf32>
    %cst_67 = arith.constant 0.000000e+00 : f32
    %186 = vector.broadcast %cst_67 : f32 to vector<1x256xf32>
    %187 = arith.select %9, %185, %186 : vector<1x256xi1>, vector<1x256xf32>
    %188 = vector.extract_strided_slice %100 {offsets = [0, 142], sizes = [1, 256], strides = [1, 1]} : vector<1x512xf32> to vector<1x256xf32>
    %cst_68 = arith.constant 0.000000e+00 : f32
    %189 = vector.broadcast %cst_68 : f32 to vector<1x256xf32>
    %190 = arith.select %18, %188, %189 : vector<1x256xi1>, vector<1x256xf32>
    %191 = vector.extract_strided_slice %100 {offsets = [0, 143], sizes = [1, 256], strides = [1, 1]} : vector<1x512xf32> to vector<1x256xf32>
    %cst_69 = arith.constant 0.000000e+00 : f32
    %192 = vector.broadcast %cst_69 : f32 to vector<1x256xf32>
    %193 = arith.select %27, %191, %192 : vector<1x256xi1>, vector<1x256xf32>
    %194 = vector.extract_strided_slice %100 {offsets = [0, 144], sizes = [1, 256], strides = [1, 1]} : vector<1x512xf32> to vector<1x256xf32>
    %cst_70 = arith.constant 0.000000e+00 : f32
    %195 = vector.broadcast %cst_70 : f32 to vector<1x256xf32>
    %196 = arith.select %36, %194, %195 : vector<1x256xi1>, vector<1x256xf32>
    %197 = vector.extract_strided_slice %100 {offsets = [0, 145], sizes = [1, 256], strides = [1, 1]} : vector<1x512xf32> to vector<1x256xf32>
    %cst_71 = arith.constant 0.000000e+00 : f32
    %198 = vector.broadcast %cst_71 : f32 to vector<1x256xf32>
    %199 = arith.select %45, %197, %198 : vector<1x256xi1>, vector<1x256xf32>
    %200 = vector.extract_strided_slice %100 {offsets = [0, 146], sizes = [1, 256], strides = [1, 1]} : vector<1x512xf32> to vector<1x256xf32>
    %cst_72 = arith.constant 0.000000e+00 : f32
    %201 = vector.broadcast %cst_72 : f32 to vector<1x256xf32>
    %202 = arith.select %54, %200, %201 : vector<1x256xi1>, vector<1x256xf32>
    %203 = vector.extract_strided_slice %100 {offsets = [0, 147], sizes = [1, 256], strides = [1, 1]} : vector<1x512xf32> to vector<1x256xf32>
    %cst_73 = arith.constant 0.000000e+00 : f32
    %204 = vector.broadcast %cst_73 : f32 to vector<1x256xf32>
    %205 = arith.select %63, %203, %204 : vector<1x256xi1>, vector<1x256xf32>
    %206 = vector.extract_strided_slice %100 {offsets = [0, 157], sizes = [1, 256], strides = [1, 1]} : vector<1x512xf32> to vector<1x256xf32>
    %cst_74 = arith.constant 0.000000e+00 : f32
    %207 = vector.broadcast %cst_74 : f32 to vector<1x256xf32>
    %208 = arith.select %9, %206, %207 : vector<1x256xi1>, vector<1x256xf32>
    %209 = vector.extract_strided_slice %100 {offsets = [0, 158], sizes = [1, 256], strides = [1, 1]} : vector<1x512xf32> to vector<1x256xf32>
    %cst_75 = arith.constant 0.000000e+00 : f32
    %210 = vector.broadcast %cst_75 : f32 to vector<1x256xf32>
    %211 = arith.select %18, %209, %210 : vector<1x256xi1>, vector<1x256xf32>
    %212 = vector.extract_strided_slice %100 {offsets = [0, 159], sizes = [1, 256], strides = [1, 1]} : vector<1x512xf32> to vector<1x256xf32>
    %cst_76 = arith.constant 0.000000e+00 : f32
    %213 = vector.broadcast %cst_76 : f32 to vector<1x256xf32>
    %214 = arith.select %27, %212, %213 : vector<1x256xi1>, vector<1x256xf32>
    %215 = vector.extract_strided_slice %100 {offsets = [0, 160], sizes = [1, 256], strides = [1, 1]} : vector<1x512xf32> to vector<1x256xf32>
    %cst_77 = arith.constant 0.000000e+00 : f32
    %216 = vector.broadcast %cst_77 : f32 to vector<1x256xf32>
    %217 = arith.select %36, %215, %216 : vector<1x256xi1>, vector<1x256xf32>
    %218 = vector.extract_strided_slice %100 {offsets = [0, 161], sizes = [1, 256], strides = [1, 1]} : vector<1x512xf32> to vector<1x256xf32>
    %cst_78 = arith.constant 0.000000e+00 : f32
    %219 = vector.broadcast %cst_78 : f32 to vector<1x256xf32>
    %220 = arith.select %45, %218, %219 : vector<1x256xi1>, vector<1x256xf32>
    %221 = vector.extract_strided_slice %100 {offsets = [0, 162], sizes = [1, 256], strides = [1, 1]} : vector<1x512xf32> to vector<1x256xf32>
    %cst_79 = arith.constant 0.000000e+00 : f32
    %222 = vector.broadcast %cst_79 : f32 to vector<1x256xf32>
    %223 = arith.select %54, %221, %222 : vector<1x256xi1>, vector<1x256xf32>
    %224 = vector.extract_strided_slice %100 {offsets = [0, 163], sizes = [1, 256], strides = [1, 1]} : vector<1x512xf32> to vector<1x256xf32>
    %cst_80 = arith.constant 0.000000e+00 : f32
    %225 = vector.broadcast %cst_80 : f32 to vector<1x256xf32>
    %226 = arith.select %63, %224, %225 : vector<1x256xi1>, vector<1x256xf32>
    %227 = vector.extract_strided_slice %100 {offsets = [0, 173], sizes = [1, 256], strides = [1, 1]} : vector<1x512xf32> to vector<1x256xf32>
    %cst_81 = arith.constant 0.000000e+00 : f32
    %228 = vector.broadcast %cst_81 : f32 to vector<1x256xf32>
    %229 = arith.select %9, %227, %228 : vector<1x256xi1>, vector<1x256xf32>
    %230 = vector.extract_strided_slice %100 {offsets = [0, 174], sizes = [1, 256], strides = [1, 1]} : vector<1x512xf32> to vector<1x256xf32>
    %cst_82 = arith.constant 0.000000e+00 : f32
    %231 = vector.broadcast %cst_82 : f32 to vector<1x256xf32>
    %232 = arith.select %18, %230, %231 : vector<1x256xi1>, vector<1x256xf32>
    %233 = vector.extract_strided_slice %100 {offsets = [0, 175], sizes = [1, 256], strides = [1, 1]} : vector<1x512xf32> to vector<1x256xf32>
    %cst_83 = arith.constant 0.000000e+00 : f32
    %234 = vector.broadcast %cst_83 : f32 to vector<1x256xf32>
    %235 = arith.select %27, %233, %234 : vector<1x256xi1>, vector<1x256xf32>
    %236 = vector.extract_strided_slice %100 {offsets = [0, 176], sizes = [1, 256], strides = [1, 1]} : vector<1x512xf32> to vector<1x256xf32>
    %cst_84 = arith.constant 0.000000e+00 : f32
    %237 = vector.broadcast %cst_84 : f32 to vector<1x256xf32>
    %238 = arith.select %36, %236, %237 : vector<1x256xi1>, vector<1x256xf32>
    %239 = vector.extract_strided_slice %100 {offsets = [0, 177], sizes = [1, 256], strides = [1, 1]} : vector<1x512xf32> to vector<1x256xf32>
    %cst_85 = arith.constant 0.000000e+00 : f32
    %240 = vector.broadcast %cst_85 : f32 to vector<1x256xf32>
    %241 = arith.select %45, %239, %240 : vector<1x256xi1>, vector<1x256xf32>
    %242 = vector.extract_strided_slice %100 {offsets = [0, 178], sizes = [1, 256], strides = [1, 1]} : vector<1x512xf32> to vector<1x256xf32>
    %cst_86 = arith.constant 0.000000e+00 : f32
    %243 = vector.broadcast %cst_86 : f32 to vector<1x256xf32>
    %244 = arith.select %54, %242, %243 : vector<1x256xi1>, vector<1x256xf32>
    %245 = vector.extract_strided_slice %100 {offsets = [0, 179], sizes = [1, 256], strides = [1, 1]} : vector<1x512xf32> to vector<1x256xf32>
    %cst_87 = arith.constant 0.000000e+00 : f32
    %246 = vector.broadcast %cst_87 : f32 to vector<1x256xf32>
    %247 = arith.select %63, %245, %246 : vector<1x256xi1>, vector<1x256xf32>
    %cst_88 = arith.constant 0.000000e+00 : f32
    %248 = vector.broadcast %cst_88 : f32 to vector<1x256xf32>
    %c4_89 = arith.constant 4 : index
    %249 = memref.load %arg5[%c4_89] : memref<87xf32, #tpu.memory_space<smem>>
    %250 = vector.broadcast %249 : f32 to vector<1x256xf32>
    %251 = arith.mulf %250, %151 : vector<1x256xf32>
    %252 = arith.addf %248, %251 : vector<1x256xf32>
    %c5_90 = arith.constant 5 : index
    %253 = memref.load %arg5[%c5_90] : memref<87xf32, #tpu.memory_space<smem>>
    %254 = vector.broadcast %253 : f32 to vector<1x256xf32>
    %255 = arith.mulf %254, %154 : vector<1x256xf32>
    %256 = arith.addf %252, %255 : vector<1x256xf32>
    %c6 = arith.constant 6 : index
    %257 = memref.load %arg5[%c6] : memref<87xf32, #tpu.memory_space<smem>>
    %258 = vector.broadcast %257 : f32 to vector<1x256xf32>
    %259 = arith.mulf %258, %157 : vector<1x256xf32>
    %260 = arith.addf %256, %259 : vector<1x256xf32>
    %c7 = arith.constant 7 : index
    %261 = memref.load %arg5[%c7] : memref<87xf32, #tpu.memory_space<smem>>
    %262 = vector.broadcast %261 : f32 to vector<1x256xf32>
    %263 = arith.mulf %262, %172 : vector<1x256xf32>
    %264 = arith.addf %260, %263 : vector<1x256xf32>
    %c8 = arith.constant 8 : index
    %265 = memref.load %arg5[%c8] : memref<87xf32, #tpu.memory_space<smem>>
    %266 = vector.broadcast %265 : f32 to vector<1x256xf32>
    %267 = arith.mulf %266, %175 : vector<1x256xf32>
    %268 = arith.addf %264, %267 : vector<1x256xf32>
    %c9 = arith.constant 9 : index
    %269 = memref.load %arg5[%c9] : memref<87xf32, #tpu.memory_space<smem>>
    %270 = vector.broadcast %269 : f32 to vector<1x256xf32>
    %271 = arith.mulf %270, %178 : vector<1x256xf32>
    %272 = arith.addf %268, %271 : vector<1x256xf32>
    %c10 = arith.constant 10 : index
    %273 = memref.load %arg5[%c10] : memref<87xf32, #tpu.memory_space<smem>>
    %274 = vector.broadcast %273 : f32 to vector<1x256xf32>
    %275 = arith.mulf %274, %193 : vector<1x256xf32>
    %276 = arith.addf %272, %275 : vector<1x256xf32>
    %c11 = arith.constant 11 : index
    %277 = memref.load %arg5[%c11] : memref<87xf32, #tpu.memory_space<smem>>
    %278 = vector.broadcast %277 : f32 to vector<1x256xf32>
    %279 = arith.mulf %278, %196 : vector<1x256xf32>
    %280 = arith.addf %276, %279 : vector<1x256xf32>
    %c12 = arith.constant 12 : index
    %281 = memref.load %arg5[%c12] : memref<87xf32, #tpu.memory_space<smem>>
    %282 = vector.broadcast %281 : f32 to vector<1x256xf32>
    %283 = arith.mulf %282, %199 : vector<1x256xf32>
    %284 = arith.addf %280, %283 : vector<1x256xf32>
    %c1 = arith.constant 1 : index
    %285 = memref.load %arg5[%c1] : memref<87xf32, #tpu.memory_space<smem>>
    %286 = vector.broadcast %285 : f32 to vector<1x256xf32>
    %287 = arith.addf %284, %286 : vector<1x256xf32>
    %cst_91 = arith.constant 0.000000e+00 : f32
    %288 = vector.broadcast %cst_91 : f32 to vector<1x256xf32>
    %c13 = arith.constant 13 : index
    %289 = memref.load %arg5[%c13] : memref<87xf32, #tpu.memory_space<smem>>
    %290 = vector.broadcast %289 : f32 to vector<1x256xf32>
    %291 = arith.mulf %290, %127 : vector<1x256xf32>
    %292 = arith.addf %288, %291 : vector<1x256xf32>
    %c14 = arith.constant 14 : index
    %293 = memref.load %arg5[%c14] : memref<87xf32, #tpu.memory_space<smem>>
    %294 = vector.broadcast %293 : f32 to vector<1x256xf32>
    %295 = arith.mulf %294, %130 : vector<1x256xf32>
    %296 = arith.addf %292, %295 : vector<1x256xf32>
    %c15 = arith.constant 15 : index
    %297 = memref.load %arg5[%c15] : memref<87xf32, #tpu.memory_space<smem>>
    %298 = vector.broadcast %297 : f32 to vector<1x256xf32>
    %299 = arith.mulf %298, %133 : vector<1x256xf32>
    %300 = arith.addf %296, %299 : vector<1x256xf32>
    %c16 = arith.constant 16 : index
    %301 = memref.load %arg5[%c16] : memref<87xf32, #tpu.memory_space<smem>>
    %302 = vector.broadcast %301 : f32 to vector<1x256xf32>
    %303 = arith.mulf %302, %136 : vector<1x256xf32>
    %304 = arith.addf %300, %303 : vector<1x256xf32>
    %c17 = arith.constant 17 : index
    %305 = memref.load %arg5[%c17] : memref<87xf32, #tpu.memory_space<smem>>
    %306 = vector.broadcast %305 : f32 to vector<1x256xf32>
    %307 = arith.mulf %306, %139 : vector<1x256xf32>
    %308 = arith.addf %304, %307 : vector<1x256xf32>
    %c18 = arith.constant 18 : index
    %309 = memref.load %arg5[%c18] : memref<87xf32, #tpu.memory_space<smem>>
    %310 = vector.broadcast %309 : f32 to vector<1x256xf32>
    %311 = arith.mulf %310, %148 : vector<1x256xf32>
    %312 = arith.addf %308, %311 : vector<1x256xf32>
    %c19 = arith.constant 19 : index
    %313 = memref.load %arg5[%c19] : memref<87xf32, #tpu.memory_space<smem>>
    %314 = vector.broadcast %313 : f32 to vector<1x256xf32>
    %315 = arith.mulf %314, %151 : vector<1x256xf32>
    %316 = arith.addf %312, %315 : vector<1x256xf32>
    %c20 = arith.constant 20 : index
    %317 = memref.load %arg5[%c20] : memref<87xf32, #tpu.memory_space<smem>>
    %318 = vector.broadcast %317 : f32 to vector<1x256xf32>
    %319 = arith.mulf %318, %154 : vector<1x256xf32>
    %320 = arith.addf %316, %319 : vector<1x256xf32>
    %c21 = arith.constant 21 : index
    %321 = memref.load %arg5[%c21] : memref<87xf32, #tpu.memory_space<smem>>
    %322 = vector.broadcast %321 : f32 to vector<1x256xf32>
    %323 = arith.mulf %322, %157 : vector<1x256xf32>
    %324 = arith.addf %320, %323 : vector<1x256xf32>
    %c22 = arith.constant 22 : index
    %325 = memref.load %arg5[%c22] : memref<87xf32, #tpu.memory_space<smem>>
    %326 = vector.broadcast %325 : f32 to vector<1x256xf32>
    %327 = arith.mulf %326, %160 : vector<1x256xf32>
    %328 = arith.addf %324, %327 : vector<1x256xf32>
    %c23 = arith.constant 23 : index
    %329 = memref.load %arg5[%c23] : memref<87xf32, #tpu.memory_space<smem>>
    %330 = vector.broadcast %329 : f32 to vector<1x256xf32>
    %331 = arith.mulf %330, %169 : vector<1x256xf32>
    %332 = arith.addf %328, %331 : vector<1x256xf32>
    %c24 = arith.constant 24 : index
    %333 = memref.load %arg5[%c24] : memref<87xf32, #tpu.memory_space<smem>>
    %334 = vector.broadcast %333 : f32 to vector<1x256xf32>
    %335 = arith.mulf %334, %172 : vector<1x256xf32>
    %336 = arith.addf %332, %335 : vector<1x256xf32>
    %c25 = arith.constant 25 : index
    %337 = memref.load %arg5[%c25] : memref<87xf32, #tpu.memory_space<smem>>
    %338 = vector.broadcast %337 : f32 to vector<1x256xf32>
    %339 = arith.mulf %338, %175 : vector<1x256xf32>
    %340 = arith.addf %336, %339 : vector<1x256xf32>
    %c26 = arith.constant 26 : index
    %341 = memref.load %arg5[%c26] : memref<87xf32, #tpu.memory_space<smem>>
    %342 = vector.broadcast %341 : f32 to vector<1x256xf32>
    %343 = arith.mulf %342, %178 : vector<1x256xf32>
    %344 = arith.addf %340, %343 : vector<1x256xf32>
    %c27 = arith.constant 27 : index
    %345 = memref.load %arg5[%c27] : memref<87xf32, #tpu.memory_space<smem>>
    %346 = vector.broadcast %345 : f32 to vector<1x256xf32>
    %347 = arith.mulf %346, %181 : vector<1x256xf32>
    %348 = arith.addf %344, %347 : vector<1x256xf32>
    %c28 = arith.constant 28 : index
    %349 = memref.load %arg5[%c28] : memref<87xf32, #tpu.memory_space<smem>>
    %350 = vector.broadcast %349 : f32 to vector<1x256xf32>
    %351 = arith.mulf %350, %190 : vector<1x256xf32>
    %352 = arith.addf %348, %351 : vector<1x256xf32>
    %c29 = arith.constant 29 : index
    %353 = memref.load %arg5[%c29] : memref<87xf32, #tpu.memory_space<smem>>
    %354 = vector.broadcast %353 : f32 to vector<1x256xf32>
    %355 = arith.mulf %354, %193 : vector<1x256xf32>
    %356 = arith.addf %352, %355 : vector<1x256xf32>
    %c30 = arith.constant 30 : index
    %357 = memref.load %arg5[%c30] : memref<87xf32, #tpu.memory_space<smem>>
    %358 = vector.broadcast %357 : f32 to vector<1x256xf32>
    %359 = arith.mulf %358, %196 : vector<1x256xf32>
    %360 = arith.addf %356, %359 : vector<1x256xf32>
    %c31 = arith.constant 31 : index
    %361 = memref.load %arg5[%c31] : memref<87xf32, #tpu.memory_space<smem>>
    %362 = vector.broadcast %361 : f32 to vector<1x256xf32>
    %363 = arith.mulf %362, %199 : vector<1x256xf32>
    %364 = arith.addf %360, %363 : vector<1x256xf32>
    %c32 = arith.constant 32 : index
    %365 = memref.load %arg5[%c32] : memref<87xf32, #tpu.memory_space<smem>>
    %366 = vector.broadcast %365 : f32 to vector<1x256xf32>
    %367 = arith.mulf %366, %202 : vector<1x256xf32>
    %368 = arith.addf %364, %367 : vector<1x256xf32>
    %c33 = arith.constant 33 : index
    %369 = memref.load %arg5[%c33] : memref<87xf32, #tpu.memory_space<smem>>
    %370 = vector.broadcast %369 : f32 to vector<1x256xf32>
    %371 = arith.mulf %370, %211 : vector<1x256xf32>
    %372 = arith.addf %368, %371 : vector<1x256xf32>
    %c34 = arith.constant 34 : index
    %373 = memref.load %arg5[%c34] : memref<87xf32, #tpu.memory_space<smem>>
    %374 = vector.broadcast %373 : f32 to vector<1x256xf32>
    %375 = arith.mulf %374, %214 : vector<1x256xf32>
    %376 = arith.addf %372, %375 : vector<1x256xf32>
    %c35 = arith.constant 35 : index
    %377 = memref.load %arg5[%c35] : memref<87xf32, #tpu.memory_space<smem>>
    %378 = vector.broadcast %377 : f32 to vector<1x256xf32>
    %379 = arith.mulf %378, %217 : vector<1x256xf32>
    %380 = arith.addf %376, %379 : vector<1x256xf32>
    %c36 = arith.constant 36 : index
    %381 = memref.load %arg5[%c36] : memref<87xf32, #tpu.memory_space<smem>>
    %382 = vector.broadcast %381 : f32 to vector<1x256xf32>
    %383 = arith.mulf %382, %220 : vector<1x256xf32>
    %384 = arith.addf %380, %383 : vector<1x256xf32>
    %c37 = arith.constant 37 : index
    %385 = memref.load %arg5[%c37] : memref<87xf32, #tpu.memory_space<smem>>
    %386 = vector.broadcast %385 : f32 to vector<1x256xf32>
    %387 = arith.mulf %386, %223 : vector<1x256xf32>
    %388 = arith.addf %384, %387 : vector<1x256xf32>
    %c2_92 = arith.constant 2 : index
    %389 = memref.load %arg5[%c2_92] : memref<87xf32, #tpu.memory_space<smem>>
    %390 = vector.broadcast %389 : f32 to vector<1x256xf32>
    %391 = arith.addf %388, %390 : vector<1x256xf32>
    %392 = arith.addf %287, %391 : vector<1x256xf32>
    %cst_93 = arith.constant 0.000000e+00 : f32
    %393 = vector.broadcast %cst_93 : f32 to vector<1x256xf32>
    %c38 = arith.constant 38 : index
    %394 = memref.load %arg5[%c38] : memref<87xf32, #tpu.memory_space<smem>>
    %395 = vector.broadcast %394 : f32 to vector<1x256xf32>
    %396 = arith.mulf %395, %103 : vector<1x256xf32>
    %397 = arith.addf %393, %396 : vector<1x256xf32>
    %c39 = arith.constant 39 : index
    %398 = memref.load %arg5[%c39] : memref<87xf32, #tpu.memory_space<smem>>
    %399 = vector.broadcast %398 : f32 to vector<1x256xf32>
    %400 = arith.mulf %399, %106 : vector<1x256xf32>
    %401 = arith.addf %397, %400 : vector<1x256xf32>
    %c40 = arith.constant 40 : index
    %402 = memref.load %arg5[%c40] : memref<87xf32, #tpu.memory_space<smem>>
    %403 = vector.broadcast %402 : f32 to vector<1x256xf32>
    %404 = arith.mulf %403, %109 : vector<1x256xf32>
    %405 = arith.addf %401, %404 : vector<1x256xf32>
    %c41 = arith.constant 41 : index
    %406 = memref.load %arg5[%c41] : memref<87xf32, #tpu.memory_space<smem>>
    %407 = vector.broadcast %406 : f32 to vector<1x256xf32>
    %408 = arith.mulf %407, %112 : vector<1x256xf32>
    %409 = arith.addf %405, %408 : vector<1x256xf32>
    %c42 = arith.constant 42 : index
    %410 = memref.load %arg5[%c42] : memref<87xf32, #tpu.memory_space<smem>>
    %411 = vector.broadcast %410 : f32 to vector<1x256xf32>
    %412 = arith.mulf %411, %115 : vector<1x256xf32>
    %413 = arith.addf %409, %412 : vector<1x256xf32>
    %c43 = arith.constant 43 : index
    %414 = memref.load %arg5[%c43] : memref<87xf32, #tpu.memory_space<smem>>
    %415 = vector.broadcast %414 : f32 to vector<1x256xf32>
    %416 = arith.mulf %415, %118 : vector<1x256xf32>
    %417 = arith.addf %413, %416 : vector<1x256xf32>
    %c44 = arith.constant 44 : index
    %418 = memref.load %arg5[%c44] : memref<87xf32, #tpu.memory_space<smem>>
    %419 = vector.broadcast %418 : f32 to vector<1x256xf32>
    %420 = arith.mulf %419, %121 : vector<1x256xf32>
    %421 = arith.addf %417, %420 : vector<1x256xf32>
    %c45 = arith.constant 45 : index
    %422 = memref.load %arg5[%c45] : memref<87xf32, #tpu.memory_space<smem>>
    %423 = vector.broadcast %422 : f32 to vector<1x256xf32>
    %424 = arith.mulf %423, %124 : vector<1x256xf32>
    %425 = arith.addf %421, %424 : vector<1x256xf32>
    %c46 = arith.constant 46 : index
    %426 = memref.load %arg5[%c46] : memref<87xf32, #tpu.memory_space<smem>>
    %427 = vector.broadcast %426 : f32 to vector<1x256xf32>
    %428 = arith.mulf %427, %127 : vector<1x256xf32>
    %429 = arith.addf %425, %428 : vector<1x256xf32>
    %c47 = arith.constant 47 : index
    %430 = memref.load %arg5[%c47] : memref<87xf32, #tpu.memory_space<smem>>
    %431 = vector.broadcast %430 : f32 to vector<1x256xf32>
    %432 = arith.mulf %431, %130 : vector<1x256xf32>
    %433 = arith.addf %429, %432 : vector<1x256xf32>
    %c48 = arith.constant 48 : index
    %434 = memref.load %arg5[%c48] : memref<87xf32, #tpu.memory_space<smem>>
    %435 = vector.broadcast %434 : f32 to vector<1x256xf32>
    %436 = arith.mulf %435, %133 : vector<1x256xf32>
    %437 = arith.addf %433, %436 : vector<1x256xf32>
    %c49 = arith.constant 49 : index
    %438 = memref.load %arg5[%c49] : memref<87xf32, #tpu.memory_space<smem>>
    %439 = vector.broadcast %438 : f32 to vector<1x256xf32>
    %440 = arith.mulf %439, %136 : vector<1x256xf32>
    %441 = arith.addf %437, %440 : vector<1x256xf32>
    %c50 = arith.constant 50 : index
    %442 = memref.load %arg5[%c50] : memref<87xf32, #tpu.memory_space<smem>>
    %443 = vector.broadcast %442 : f32 to vector<1x256xf32>
    %444 = arith.mulf %443, %139 : vector<1x256xf32>
    %445 = arith.addf %441, %444 : vector<1x256xf32>
    %c51 = arith.constant 51 : index
    %446 = memref.load %arg5[%c51] : memref<87xf32, #tpu.memory_space<smem>>
    %447 = vector.broadcast %446 : f32 to vector<1x256xf32>
    %448 = arith.mulf %447, %142 : vector<1x256xf32>
    %449 = arith.addf %445, %448 : vector<1x256xf32>
    %c52 = arith.constant 52 : index
    %450 = memref.load %arg5[%c52] : memref<87xf32, #tpu.memory_space<smem>>
    %451 = vector.broadcast %450 : f32 to vector<1x256xf32>
    %452 = arith.mulf %451, %145 : vector<1x256xf32>
    %453 = arith.addf %449, %452 : vector<1x256xf32>
    %c53 = arith.constant 53 : index
    %454 = memref.load %arg5[%c53] : memref<87xf32, #tpu.memory_space<smem>>
    %455 = vector.broadcast %454 : f32 to vector<1x256xf32>
    %456 = arith.mulf %455, %148 : vector<1x256xf32>
    %457 = arith.addf %453, %456 : vector<1x256xf32>
    %c54 = arith.constant 54 : index
    %458 = memref.load %arg5[%c54] : memref<87xf32, #tpu.memory_space<smem>>
    %459 = vector.broadcast %458 : f32 to vector<1x256xf32>
    %460 = arith.mulf %459, %151 : vector<1x256xf32>
    %461 = arith.addf %457, %460 : vector<1x256xf32>
    %c55 = arith.constant 55 : index
    %462 = memref.load %arg5[%c55] : memref<87xf32, #tpu.memory_space<smem>>
    %463 = vector.broadcast %462 : f32 to vector<1x256xf32>
    %464 = arith.mulf %463, %154 : vector<1x256xf32>
    %465 = arith.addf %461, %464 : vector<1x256xf32>
    %c56 = arith.constant 56 : index
    %466 = memref.load %arg5[%c56] : memref<87xf32, #tpu.memory_space<smem>>
    %467 = vector.broadcast %466 : f32 to vector<1x256xf32>
    %468 = arith.mulf %467, %157 : vector<1x256xf32>
    %469 = arith.addf %465, %468 : vector<1x256xf32>
    %c57 = arith.constant 57 : index
    %470 = memref.load %arg5[%c57] : memref<87xf32, #tpu.memory_space<smem>>
    %471 = vector.broadcast %470 : f32 to vector<1x256xf32>
    %472 = arith.mulf %471, %160 : vector<1x256xf32>
    %473 = arith.addf %469, %472 : vector<1x256xf32>
    %c58 = arith.constant 58 : index
    %474 = memref.load %arg5[%c58] : memref<87xf32, #tpu.memory_space<smem>>
    %475 = vector.broadcast %474 : f32 to vector<1x256xf32>
    %476 = arith.mulf %475, %163 : vector<1x256xf32>
    %477 = arith.addf %473, %476 : vector<1x256xf32>
    %c59 = arith.constant 59 : index
    %478 = memref.load %arg5[%c59] : memref<87xf32, #tpu.memory_space<smem>>
    %479 = vector.broadcast %478 : f32 to vector<1x256xf32>
    %480 = arith.mulf %479, %166 : vector<1x256xf32>
    %481 = arith.addf %477, %480 : vector<1x256xf32>
    %c60 = arith.constant 60 : index
    %482 = memref.load %arg5[%c60] : memref<87xf32, #tpu.memory_space<smem>>
    %483 = vector.broadcast %482 : f32 to vector<1x256xf32>
    %484 = arith.mulf %483, %169 : vector<1x256xf32>
    %485 = arith.addf %481, %484 : vector<1x256xf32>
    %c61 = arith.constant 61 : index
    %486 = memref.load %arg5[%c61] : memref<87xf32, #tpu.memory_space<smem>>
    %487 = vector.broadcast %486 : f32 to vector<1x256xf32>
    %488 = arith.mulf %487, %172 : vector<1x256xf32>
    %489 = arith.addf %485, %488 : vector<1x256xf32>
    %c62 = arith.constant 62 : index
    %490 = memref.load %arg5[%c62] : memref<87xf32, #tpu.memory_space<smem>>
    %491 = vector.broadcast %490 : f32 to vector<1x256xf32>
    %492 = arith.mulf %491, %175 : vector<1x256xf32>
    %493 = arith.addf %489, %492 : vector<1x256xf32>
    %c63 = arith.constant 63 : index
    %494 = memref.load %arg5[%c63] : memref<87xf32, #tpu.memory_space<smem>>
    %495 = vector.broadcast %494 : f32 to vector<1x256xf32>
    %496 = arith.mulf %495, %178 : vector<1x256xf32>
    %497 = arith.addf %493, %496 : vector<1x256xf32>
    %c64 = arith.constant 64 : index
    %498 = memref.load %arg5[%c64] : memref<87xf32, #tpu.memory_space<smem>>
    %499 = vector.broadcast %498 : f32 to vector<1x256xf32>
    %500 = arith.mulf %499, %181 : vector<1x256xf32>
    %501 = arith.addf %497, %500 : vector<1x256xf32>
    %c65 = arith.constant 65 : index
    %502 = memref.load %arg5[%c65] : memref<87xf32, #tpu.memory_space<smem>>
    %503 = vector.broadcast %502 : f32 to vector<1x256xf32>
    %504 = arith.mulf %503, %184 : vector<1x256xf32>
    %505 = arith.addf %501, %504 : vector<1x256xf32>
    %c66 = arith.constant 66 : index
    %506 = memref.load %arg5[%c66] : memref<87xf32, #tpu.memory_space<smem>>
    %507 = vector.broadcast %506 : f32 to vector<1x256xf32>
    %508 = arith.mulf %507, %187 : vector<1x256xf32>
    %509 = arith.addf %505, %508 : vector<1x256xf32>
    %c67 = arith.constant 67 : index
    %510 = memref.load %arg5[%c67] : memref<87xf32, #tpu.memory_space<smem>>
    %511 = vector.broadcast %510 : f32 to vector<1x256xf32>
    %512 = arith.mulf %511, %190 : vector<1x256xf32>
    %513 = arith.addf %509, %512 : vector<1x256xf32>
    %c68 = arith.constant 68 : index
    %514 = memref.load %arg5[%c68] : memref<87xf32, #tpu.memory_space<smem>>
    %515 = vector.broadcast %514 : f32 to vector<1x256xf32>
    %516 = arith.mulf %515, %193 : vector<1x256xf32>
    %517 = arith.addf %513, %516 : vector<1x256xf32>
    %c69 = arith.constant 69 : index
    %518 = memref.load %arg5[%c69] : memref<87xf32, #tpu.memory_space<smem>>
    %519 = vector.broadcast %518 : f32 to vector<1x256xf32>
    %520 = arith.mulf %519, %196 : vector<1x256xf32>
    %521 = arith.addf %517, %520 : vector<1x256xf32>
    %c70 = arith.constant 70 : index
    %522 = memref.load %arg5[%c70] : memref<87xf32, #tpu.memory_space<smem>>
    %523 = vector.broadcast %522 : f32 to vector<1x256xf32>
    %524 = arith.mulf %523, %199 : vector<1x256xf32>
    %525 = arith.addf %521, %524 : vector<1x256xf32>
    %c71 = arith.constant 71 : index
    %526 = memref.load %arg5[%c71] : memref<87xf32, #tpu.memory_space<smem>>
    %527 = vector.broadcast %526 : f32 to vector<1x256xf32>
    %528 = arith.mulf %527, %202 : vector<1x256xf32>
    %529 = arith.addf %525, %528 : vector<1x256xf32>
    %c72 = arith.constant 72 : index
    %530 = memref.load %arg5[%c72] : memref<87xf32, #tpu.memory_space<smem>>
    %531 = vector.broadcast %530 : f32 to vector<1x256xf32>
    %532 = arith.mulf %531, %205 : vector<1x256xf32>
    %533 = arith.addf %529, %532 : vector<1x256xf32>
    %c73 = arith.constant 73 : index
    %534 = memref.load %arg5[%c73] : memref<87xf32, #tpu.memory_space<smem>>
    %535 = vector.broadcast %534 : f32 to vector<1x256xf32>
    %536 = arith.mulf %535, %208 : vector<1x256xf32>
    %537 = arith.addf %533, %536 : vector<1x256xf32>
    %c74 = arith.constant 74 : index
    %538 = memref.load %arg5[%c74] : memref<87xf32, #tpu.memory_space<smem>>
    %539 = vector.broadcast %538 : f32 to vector<1x256xf32>
    %540 = arith.mulf %539, %211 : vector<1x256xf32>
    %541 = arith.addf %537, %540 : vector<1x256xf32>
    %c75 = arith.constant 75 : index
    %542 = memref.load %arg5[%c75] : memref<87xf32, #tpu.memory_space<smem>>
    %543 = vector.broadcast %542 : f32 to vector<1x256xf32>
    %544 = arith.mulf %543, %214 : vector<1x256xf32>
    %545 = arith.addf %541, %544 : vector<1x256xf32>
    %c76 = arith.constant 76 : index
    %546 = memref.load %arg5[%c76] : memref<87xf32, #tpu.memory_space<smem>>
    %547 = vector.broadcast %546 : f32 to vector<1x256xf32>
    %548 = arith.mulf %547, %217 : vector<1x256xf32>
    %549 = arith.addf %545, %548 : vector<1x256xf32>
    %c77 = arith.constant 77 : index
    %550 = memref.load %arg5[%c77] : memref<87xf32, #tpu.memory_space<smem>>
    %551 = vector.broadcast %550 : f32 to vector<1x256xf32>
    %552 = arith.mulf %551, %220 : vector<1x256xf32>
    %553 = arith.addf %549, %552 : vector<1x256xf32>
    %c78 = arith.constant 78 : index
    %554 = memref.load %arg5[%c78] : memref<87xf32, #tpu.memory_space<smem>>
    %555 = vector.broadcast %554 : f32 to vector<1x256xf32>
    %556 = arith.mulf %555, %223 : vector<1x256xf32>
    %557 = arith.addf %553, %556 : vector<1x256xf32>
    %c79 = arith.constant 79 : index
    %558 = memref.load %arg5[%c79] : memref<87xf32, #tpu.memory_space<smem>>
    %559 = vector.broadcast %558 : f32 to vector<1x256xf32>
    %560 = arith.mulf %559, %226 : vector<1x256xf32>
    %561 = arith.addf %557, %560 : vector<1x256xf32>
    %c80 = arith.constant 80 : index
    %562 = memref.load %arg5[%c80] : memref<87xf32, #tpu.memory_space<smem>>
    %563 = vector.broadcast %562 : f32 to vector<1x256xf32>
    %564 = arith.mulf %563, %229 : vector<1x256xf32>
    %565 = arith.addf %561, %564 : vector<1x256xf32>
    %c81 = arith.constant 81 : index
    %566 = memref.load %arg5[%c81] : memref<87xf32, #tpu.memory_space<smem>>
    %567 = vector.broadcast %566 : f32 to vector<1x256xf32>
    %568 = arith.mulf %567, %232 : vector<1x256xf32>
    %569 = arith.addf %565, %568 : vector<1x256xf32>
    %c82 = arith.constant 82 : index
    %570 = memref.load %arg5[%c82] : memref<87xf32, #tpu.memory_space<smem>>
    %571 = vector.broadcast %570 : f32 to vector<1x256xf32>
    %572 = arith.mulf %571, %235 : vector<1x256xf32>
    %573 = arith.addf %569, %572 : vector<1x256xf32>
    %c83 = arith.constant 83 : index
    %574 = memref.load %arg5[%c83] : memref<87xf32, #tpu.memory_space<smem>>
    %575 = vector.broadcast %574 : f32 to vector<1x256xf32>
    %576 = arith.mulf %575, %238 : vector<1x256xf32>
    %577 = arith.addf %573, %576 : vector<1x256xf32>
    %c84 = arith.constant 84 : index
    %578 = memref.load %arg5[%c84] : memref<87xf32, #tpu.memory_space<smem>>
    %579 = vector.broadcast %578 : f32 to vector<1x256xf32>
    %580 = arith.mulf %579, %241 : vector<1x256xf32>
    %581 = arith.addf %577, %580 : vector<1x256xf32>
    %c85 = arith.constant 85 : index
    %582 = memref.load %arg5[%c85] : memref<87xf32, #tpu.memory_space<smem>>
    %583 = vector.broadcast %582 : f32 to vector<1x256xf32>
    %584 = arith.mulf %583, %244 : vector<1x256xf32>
    %585 = arith.addf %581, %584 : vector<1x256xf32>
    %c86 = arith.constant 86 : index
    %586 = memref.load %arg5[%c86] : memref<87xf32, #tpu.memory_space<smem>>
    %587 = vector.broadcast %586 : f32 to vector<1x256xf32>
    %588 = arith.mulf %587, %247 : vector<1x256xf32>
    %589 = arith.addf %585, %588 : vector<1x256xf32>
    %c3 = arith.constant 3 : index
    %590 = memref.load %arg5[%c3] : memref<87xf32, #tpu.memory_space<smem>>
    %591 = vector.broadcast %590 : f32 to vector<1x256xf32>
    %592 = arith.addf %589, %591 : vector<1x256xf32>
    %593 = arith.addf %392, %592 : vector<1x256xf32>
    %594 = arith.negf %593 : vector<1x256xf32>
    %595 = math.exp %594 : vector<1x256xf32>
    %cst_94 = arith.constant 1.000000e+00 : f32
    %596 = vector.broadcast %cst_94 : f32 to vector<1x256xf32>
    %597 = arith.addf %596, %595 : vector<1x256xf32>
    %598 = arith.divf %596, %597 : vector<1x256xf32>
    %599 = vector.broadcast %598 : vector<1x256xf32> to vector<32x256xf32>
    %600 = arith.mulf %599, %70 : vector<32x256xf32>
    %601 = vector.broadcast %92 : vector<32x1xf32> to vector<32x256xf32>
    %602 = arith.mulf %70, %601 : vector<32x256xf32>
    %603 = arith.mulf %600, %602 : vector<32x256xf32>
    %c0_95 = arith.constant 0 : index
    %c0_96 = arith.constant 0 : index
    %c0_97 = arith.constant 0 : index
    %604 = vector.load %arg6[%c0_95, %c0_96, %c0_97] : memref<1x32x256xf32, #tpu.memory_space<vmem>>, vector<1x32x256xf32>
    %605 = vector.shape_cast %604 : vector<1x32x256xf32> to vector<32x256xf32>
    %606 = vector.shape_cast %603 : vector<32x256xf32> to vector<1x32x256xf32>
    tpu.vector_store %arg6[%c0_95, %c0_96, %c0_97], %606 {strides = array<i32>} : memref<1x32x256xf32, #tpu.memory_space<vmem>>, vector<1x32x256xf32>,
    return
  }
  func.func @transform_0(%arg0: i32) -> (i32, i32, i32) {
    %c0_i32 = arith.constant 0 : i32
    %c0_i32_0 = arith.constant 0 : i32
    %c0_i32_1 = arith.constant 0 : i32
    return %arg0, %c0_i32, %c0_i32_0 : i32, i32, i32
  }
  func.func @transform_1(%arg0: i32) -> (i32, i32) {
    %c0_i32 = arith.constant 0 : i32
    %c0_i32_0 = arith.constant 0 : i32
    %c0_i32_1 = arith.constant 0 : i32
    return %c0_i32, %c0_i32_0 : i32, i32
  }
  func.func @transform_2(%arg0: i32) -> (i32, i32) {
    %c0_i32 = arith.constant 0 : i32
    %c0_i32_0 = arith.constant 0 : i32
    %c0_i32_1 = arith.constant 0 : i32
    return %c0_i32, %c0_i32_0 : i32, i32
  }
  func.func @transform_3(%arg0: i32) -> (i32, i32) {
    %c0_i32 = arith.constant 0 : i32
    %c0_i32_0 = arith.constant 0 : i32
    %c0_i32_1 = arith.constant 0 : i32
    return %c0_i32, %c0_i32_0 : i32, i32
  }
  func.func @transform_4(%arg0: i32) -> i32 {
    %c0_i32 = arith.constant 0 : i32
    %c0_i32_0 = arith.constant 0 : i32
    return %c0_i32 : i32
  }
  func.func @transform_5(%arg0: i32) -> (i32, i32, i32) {
    %c0_i32 = arith.constant 0 : i32
    %c0_i32_0 = arith.constant 0 : i32
    %c0_i32_1 = arith.constant 0 : i32
    return %arg0, %c0_i32, %c0_i32_0 : i32, i32, i32
  }
}

</mosaic_0001>

<llo_original>
// kernel: tpu_custom_call.1
$region0: #{tpu_custom_call.1}
  #allocation0 [shape = 'u32[]', space=smem, size = 0x4, offset = 0x4, fixed_abs, tag = 'smem constant byte address 0x4 - core index']
  #allocation1 [shape = 'u32[144,128]{1,0:T(1,128)}', space=vmem, size = 0x12000, scoped, tag = 'internal scratch']
  %s0 = inlined_call_operand.hbm [shape: f32[2,32,256], index: 0, kind: input, shape index: {}]
  %s1 = inlined_call_operand.vmem [shape: f32[32,6], index: 1, kind: input, shape index: {}]
  %s2 = inlined_call_operand.vmem [shape: f32[1,2], index: 2, kind: input, shape index: {}]
  %s3 = inlined_call_operand.vmem [shape: s32[1,256], index: 3, kind: input, shape index: {}]
  %s4 = inlined_call_operand.vmem [shape: f32[87], index: 4, kind: input, shape index: {}]
  %s5 = inlined_call_operand.hbm [shape: f32[2,32,256], index: 5, kind: output, shape index: {}]
  %s6 = sld [smem:[#allocation0]]
  $region61: #{tpu_custom_call.1} parent=0
    _
  %s8 = ssub.s32 1, %s6
  %s9 = scalar_select 0, %s8, %s6
  $region1: #{tpu_custom_call.1} parent=0
    #allocation2 [shape = 'u8[65536]{0}', space=vmem, size = 0x10000, scoped, tag = 'input window, operand 0']
    #allocation3 [shape = 's32[2]{0}', space=sflag, size = 0x8, scoped, tag = 'scoped memory for tpu_custom_call.1']
    #allocation4 [shape = 's32[2]{0}', space=sflag, size = 0x8, scoped, tag = 'scoped memory for tpu_custom_call.1']
    #allocation5 [shape = 's32[2]{0}', space=sflag, size = 0x8, scoped, tag = 'scoped memory for tpu_custom_call.1']
    #allocation6 [shape = 'u8[512]{0}', space=smem, size = 0x200, scoped, tag = 'input window, operand 4, single buffered']
    #allocation7 [shape = 'u8[65536]{0}', space=vmem, size = 0x10000, scoped, tag = 'output window, operand 0']
    %10 = vsyncpa [#allocation3], 0
    %s11 = scalar_lea.sflag [#allocation3], 1
    %12 = vsyncpa %s11, 0
    %13 = vsyncpa [#allocation5], 0
    %14 = vsyncpa [#allocation4], 0
    %s15 = scalar_lea.sflag [#allocation4], 1
    %16 = vsyncpa %s15, 0
    loop: start=0, step=1, limit=4
    $region2: #{tpu_custom_call.1} parent=1 // loop_pre_header
      _
    $region3: #{tpu_custom_call.1} parent=1 // loop_header
      %s18 = sphi 0, %s22
      %p19 = scmp.ge.s32.totalorder %s18, 4
      %s28 = sphi 0, %s30
      %s31 = sphi 0, %s28
      %s32 = sphi 0, %s31
      %s48 = sphi 0, %s32
      %s52 = sphi 0, %s52
      %s54 = sphi 0, %s52
      %s55 = sphi 0, %s54
      %s69 = sphi 0, %s55
      %s73 = sphi 0, %s73
      %s75 = sphi 0, %s73
      %s76 = sphi 0, %s75
      %s90 = sphi 0, %s76
      %s94 = sphi 0, %s94
      %s96 = sphi 0, %s94
      %s97 = sphi 0, %s96
      %s111 = sphi 0, %s97
      %s115 = sphi 0, %s115
      %s117 = sphi 0, %s115
      %s118 = sphi 0, %s117
      %s132 = sphi 0, %s118
      %s138 = sphi 0, %s140
      %s141 = sphi 0, %s138
      %s142 = sphi 0, %s141
      %s158 = sphi 0, %s142
    $region4: #{tpu_custom_call.1} parent=1 // loop_header_branch
      %21 = sbr.rel (%p19) target = $region8
    $region5: #{tpu_custom_call.1} parent=1 // loop_body
      %s23 = ssub.s32 %s18, 1
      %s24 = ssub.s32 %s18, 2
      %s25 = sadd.s32 %s18, 1
      %s26 = ssub.s32 %s18, %s25
      %p27 = scmp.eq.s32.totalorder %s26, 0
      %s29 = sadd.s32 %s28, 1
      %s30 = scalar_select %p27, %s28, %s29
      %p33 = pneg %p27
      %p34 = scmp.eq.s32.totalorder %s18, 1
      %p35 = por %p33, %p34
      %p36 = scmp.ne.s32.totalorder %s28, %s31
      %p37 = scmp.eq.s32.totalorder %s18, 0
      %p38 = por %p36, %p37
      %p39 = scmp.ne.s32.totalorder %s28, %s31
      %p40 = scmp.eq.s32.totalorder %s23, 1
      %p41 = por %p39, %p40
      %p42 = scmp.ne.s32.totalorder %s31, %s32
      %p43 = scmp.eq.s32.totalorder %s23, 0
      %p44 = por %p42, %p43
      %p45 = scmp.ne.s32.totalorder %s31, %s32
      %p46 = scmp.eq.s32.totalorder %s24, 1
      %p47 = por %p45, %p46
      %p49 = scmp.ne.s32.totalorder %s32, %s48
      %p50 = scmp.eq.s32.totalorder %s24, 0
      %p51 = por %p49, %p50
      %s53 = sadd.s32 %s52, 1
      %p56 = scmp.eq.s32.totalorder %s18, 1
      %p57 = scmp.ne.s32.totalorder %s52, %s54
      %p58 = scmp.eq.s32.totalorder %s18, 0
      %p59 = por %p57, %p58
      %p60 = scmp.ne.s32.totalorder %s52, %s54
      %p61 = scmp.eq.s32.totalorder %s23, 1
      %p62 = por %p60, %p61
      %p63 = scmp.ne.s32.totalorder %s54, %s55
      %p64 = scmp.eq.s32.totalorder %s23, 0
      %p65 = por %p63, %p64
      %p66 = scmp.ne.s32.totalorder %s54, %s55
      %p67 = scmp.eq.s32.totalorder %s24, 1
      %p68 = por %p66, %p67
      %p70 = scmp.ne.s32.totalorder %s55, %s69
      %p71 = scmp.eq.s32.totalorder %s24, 0
      %p72 = por %p70, %p71
      %s74 = sadd.s32 %s73, 1
      %p77 = scmp.eq.s32.totalorder %s18, 1
      %p78 = scmp.ne.s32.totalorder %s73, %s75
      %p79 = scmp.eq.s32.totalorder %s18, 0
      %p80 = por %p78, %p79
      %p81 = scmp.ne.s32.totalorder %s73, %s75
      %p82 = scmp.eq.s32.totalorder %s23, 1
      %p83 = por %p81, %p82
      %p84 = scmp.ne.s32.totalorder %s75, %s76
      %p85 = scmp.eq.s32.totalorder %s23, 0
      %p86 = por %p84, %p85
      %p87 = scmp.ne.s32.totalorder %s75, %s76
      %p88 = scmp.eq.s32.totalorder %s24, 1
      %p89 = por %p87, %p88
      %p91 = scmp.ne.s32.totalorder %s76, %s90
      %p92 = scmp.eq.s32.totalorder %s24, 0
      %p93 = por %p91, %p92
      %s95 = sadd.s32 %s94, 1
      %p98 = scmp.eq.s32.totalorder %s18, 1
      %p99 = scmp.ne.s32.totalorder %s94, %s96
      %p100 = scmp.eq.s32.totalorder %s18, 0
      %p101 = por %p99, %p100
      %p102 = scmp.ne.s32.totalorder %s94, %s96
      %p103 = scmp.eq.s32.totalorder %s23, 1
      %p104 = por %p102, %p103
      %p105 = scmp.ne.s32.totalorder %s96, %s97
      %p106 = scmp.eq.s32.totalorder %s23, 0
      %p107 = por %p105, %p106
      %p108 = scmp.ne.s32.totalorder %s96, %s97
      %p109 = scmp.eq.s32.totalorder %s24, 1
      %p110 = por %p108, %p109
      %p112 = scmp.ne.s32.totalorder %s97, %s111
      %p113 = scmp.eq.s32.totalorder %s24, 0
      %p114 = por %p112, %p113
      %s116 = sadd.s32 %s115, 1
      %p119 = scmp.eq.s32.totalorder %s18, 1
      %p120 = scmp.ne.s32.totalorder %s115, %s117
      %p121 = scmp.eq.s32.totalorder %s18, 0
      %p122 = por %p120, %p121
      %p123 = scmp.ne.s32.totalorder %s115, %s117
      %p124 = scmp.eq.s32.totalorder %s23, 1
      %p125 = por %p123, %p124
      %p126 = scmp.ne.s32.totalorder %s117, %s118
      %p127 = scmp.eq.s32.totalorder %s23, 0
      %p128 = por %p126, %p127
      %p129 = scmp.ne.s32.totalorder %s117, %s118
      %p130 = scmp.eq.s32.totalorder %s24, 1
      %p131 = por %p129, %p130
      %p133 = scmp.ne.s32.totalorder %s118, %s132
      %p134 = scmp.eq.s32.totalorder %s24, 0
      %p135 = por %p133, %p134
      %s136 = ssub.s32 %s18, %s25
      %p137 = scmp.eq.s32.totalorder %s136, 0
      %s139 = sadd.s32 %s138, 1
      %s140 = scalar_select %p137, %s138, %s139
      %p143 = pneg %p137
      %p144 = scmp.eq.s32.totalorder %s18, 1
      %p145 = por %p143, %p144
      %p146 = scmp.ne.s32.totalorder %s138, %s141
      %p147 = scmp.eq.s32.totalorder %s18, 0
      %p148 = por %p146, %p147
      %p149 = scmp.ne.s32.totalorder %s138, %s141
      %p150 = scmp.eq.s32.totalorder %s23, 1
      %p151 = por %p149, %p150
      %p152 = scmp.ne.s32.totalorder %s141, %s142
      %p153 = scmp.eq.s32.totalorder %s23, 0
      %p154 = por %p152, %p153
      %p155 = scmp.ne.s32.totalorder %s141, %s142
      %p156 = scmp.eq.s32.totalorder %s24, 1
      %p157 = por %p155, %p156
      %p159 = scmp.ne.s32.totalorder %s142, %s158
      %p160 = scmp.eq.s32.totalorder %s24, 0
      %p161 = por %p159, %p160
      %p162 = scmp.le.s32.totalorder 1, %s18
      %p163 = scmp.lt.s32.totalorder %s18, 3
      %p164 = pnand %p162, %p163
      %p165 = pneg %p164
      // Predicated region
      $region9: #{tpu_custom_call.1} parent=5 // pred_check
        _
      $region10: #{tpu_custom_call.1} parent=5 // pred_check_branch
        %167 = sbr.rel (%p164) target = $region12
      $region11: #{tpu_custom_call.1} parent=5 // pred_region
        %s168 = ssub.s32 %s18, 1
        // Predicated region
        $region13: #{tpu_custom_call.1} parent=11 // pred_check
          %p169 = pneg %p65
        $region14: #{tpu_custom_call.1} parent=11 // pred_check_branch
          %171 = sbr.rel (%p169) target = $region16
        $region15: #{tpu_custom_call.1} parent=11 // pred_region
          _
        $region16: #{tpu_custom_call.1} parent=11 // pred_fallthru
          _
        // Predicated region
        $region17: #{tpu_custom_call.1} parent=11 // pred_check
          %p172 = pneg %p86
        $region18: #{tpu_custom_call.1} parent=11 // pred_check_branch
          %174 = sbr.rel (%p172) target = $region20
        $region19: #{tpu_custom_call.1} parent=11 // pred_region
          _
        $region20: #{tpu_custom_call.1} parent=11 // pred_fallthru
          _
        // Predicated region
        $region21: #{tpu_custom_call.1} parent=11 // pred_check
          %p175 = pneg %p107
        $region22: #{tpu_custom_call.1} parent=11 // pred_check_branch
          %177 = sbr.rel (%p175) target = $region24
        $region23: #{tpu_custom_call.1} parent=11 // pred_region
          _
        $region24: #{tpu_custom_call.1} parent=11 // pred_fallthru
          _
        // Predicated region
        $region25: #{tpu_custom_call.1} parent=11 // pred_check
          %p178 = pneg %p128
        $region26: #{tpu_custom_call.1} parent=11 // pred_check_branch
          %180 = sbr.rel (%p178) target = $region28
        $region27: #{tpu_custom_call.1} parent=11 // pred_region
          %s182 = ssub.s32 16, 16
          %183 = vsyncadd [#allocation5], %s182
          %s185 = sshll.u32 %s4, 4
          %s186 = int_to_ptr.vmem [resolvable:$true] %s185
          %188 = dma.vmem_to_smem %s186, 16, [#allocation6], [#allocation5]
        $region28: #{tpu_custom_call.1} parent=11 // pred_fallthru
          _
      $region12: #{tpu_custom_call.1} parent=5 // pred_fallthru
        _
      %p189 = scmp.lt.s32.totalorder %s18, 2
      // Predicated region
      $region29: #{tpu_custom_call.1} parent=5 // pred_check
        %p190 = pneg %p189
      $region30: #{tpu_custom_call.1} parent=5 // pred_check_branch
        %192 = sbr.rel (%p190) target = $region32
      $region31: #{tpu_custom_call.1} parent=5 // pred_region
        // Predicated region
        $region33: #{tpu_custom_call.1} parent=31 // pred_check
          %p193 = pneg %p38
        $region34: #{tpu_custom_call.1} parent=31 // pred_check_branch
          %195 = sbr.rel (%p193) target = $region36
        $region35: #{tpu_custom_call.1} parent=31 // pred_region
          %s196 = sand.u32 %s28, 1
          %s197 = scalar_lea.sflag [#allocation3], %s196
          %s198 = sand.u32 %s28, 1
          %s199 = smul.addr %s198, 64
          %s200 = scalar_lea.vmem [#allocation2], %s199
          %s202 = ssub.s32 1024, 1024
          %203 = vsyncadd %s197, %s202
          %s204 = smul.addr %s18, 8
          %s205 = smul.addr %s204, 128
          %s206 = scalar_lea.hbm %s0, %s205
          %s207 = sshll.u32 %s200, 4
          %s208 = int_to_ptr.vmem [resolvable:$true] %s207
          %213 = dma.hbm_to_vmem [thread:$0]  %s206, 1024, %s208, %s197, 256, 256, 16
        $region36: #{tpu_custom_call.1} parent=31 // pred_fallthru
          _
      $region32: #{tpu_custom_call.1} parent=5 // pred_fallthru
        _
      %p214 = scmp.le.s32.totalorder 1, %s18
      %p215 = scmp.lt.s32.totalorder %s18, 3
      %p216 = pnand %p214, %p215
      %p217 = pneg %p216
      // Predicated region
      $region37: #{tpu_custom_call.1} parent=5 // pred_check
        _
      $region38: #{tpu_custom_call.1} parent=5 // pred_check_branch
        %219 = sbr.rel (%p216) target = $region40
      $region39: #{tpu_custom_call.1} parent=5 // pred_region
        %s220 = ssub.s32 %s18, 1
        %s221 = sand.u32 %s31, 1
        %s222 = scalar_lea.sflag [#allocation3], %s221
        %s223 = sand.u32 %s31, 1
        %s224 = smul.addr %s223, 64
        %s225 = scalar_lea.vmem [#allocation2], %s224
        // Predicated region
        $region41: #{tpu_custom_call.1} parent=39 // pred_check
          %p226 = pneg %p44
        $region42: #{tpu_custom_call.1} parent=39 // pred_check_branch
          %228 = sbr.rel (%p226) target = $region44
        $region43: #{tpu_custom_call.1} parent=39 // pred_region
          %229 = dma.done %s222, 1024
        $region44: #{tpu_custom_call.1} parent=39 // pred_fallthru
          _
        // Predicated region
        $region45: #{tpu_custom_call.1} parent=39 // pred_check
          %p230 = pneg %p128
        $region46: #{tpu_custom_call.1} parent=39 // pred_check_branch
          %232 = sbr.rel (%p230) target = $region48
        $region47: #{tpu_custom_call.1} parent=39 // pred_region
          %233 = dma.done [#allocation5], 16
        $region48: #{tpu_custom_call.1} parent=39 // pred_fallthru
          _
        %234 = sfence
        %s235 = sand.u32 %s31, 1
        %s236 = scalar_lea.sflag [#allocation3], %s235
        %s237 = sand.u32 %s31, 1
        %s238 = smul.addr %s237, 64
        %s239 = scalar_lea.vmem [#allocation2], %s238
        %p240 = pneg %p44
        %p241 = pneg %p41
        %p242 = pneg %p65
        %p243 = pneg %p62
        %p244 = pneg %p86
        %p245 = pneg %p83
        %p246 = pneg %p107
        %p247 = pneg %p104
        %p248 = pneg %p128
        %p249 = pneg %p125
        %p250 = pneg %p154
        %p251 = pneg %p151
        %s252 = sand.u32 %s141, 1
        %s253 = scalar_lea.sflag [#allocation4], %s252
        %s254 = sand.u32 %s141, 1
        %s255 = smul.addr %s254, 64
        %s256 = scalar_lea.vmem [#allocation7], %s255
        %v257 = vld [vmem:[%s3] sm:$0x3]
        %v258 = vadd.s32 %v257, 4294967293
        %vm259 = vcmp.ge.s32.totalorder %v258, 0
        %vm260 = vcmp.lt.s32.totalorder %v258, 16
        %vm261 = vmand %vm259, %vm260
        %v262 = vadd.s32 %v257, 4294967294
        %vm263 = vcmp.ge.s32.totalorder %v262, 0
        %vm264 = vcmp.lt.s32.totalorder %v262, 16
        %vm265 = vmand %vm263, %vm264
        %v266 = vadd.s32 %v257, 4294967295
        %vm267 = vcmp.ge.s32.totalorder %v266, 0
        %vm268 = vcmp.lt.s32.totalorder %v266, 16
        %vm269 = vmand %vm267, %vm268
        %vm270 = vcmp.ge.s32.totalorder %v257, 0
        %vm271 = vcmp.lt.s32.totalorder %v257, 16
        %vm272 = vmand %vm270, %vm271
        %v273 = vadd.s32 %v257, 1
        %vm274 = vcmp.ge.s32.totalorder %v273, 0
        %vm275 = vcmp.lt.s32.totalorder %v273, 16
        %vm276 = vmand %vm274, %vm275
        %v277 = vadd.s32 %v257, 2
        %vm278 = vcmp.ge.s32.totalorder %v277, 0
        %vm279 = vcmp.lt.s32.totalorder %v277, 16
        %vm280 = vmand %vm278, %vm279
        %v281 = vadd.s32 %v257, 3
        %vm282 = vcmp.ge.s32.totalorder %v281, 0
        %vm283 = vcmp.lt.s32.totalorder %v281, 16
        %vm284 = vmand %vm282, %vm283
        %v285 = vld [vmem:[%s1] sm:$0xff]
        %v286 = vld [vmem:[%s1 + $0x8] sm:$0xff]
        %v287 = vld [vmem:[%s1 + $0x10] sm:$0xff]
        %v288 = vld [vmem:[%s1 + $0x18] sm:$0xff]
        %v289 = vld [vmem:[%s225] sm:$0xff]
        %v290 = vld [vmem:[%s225 + $0x8] sm:$0xff]
        %v291 = vld [vmem:[%s225 + $0x10] sm:$0xff]
        %v292 = vld [vmem:[%s225 + $0x18] sm:$0xff]
        %v293 = vld [vmem:[%s225 + $0x20] sm:$0xff]
        %v294 = vld [vmem:[%s225 + $0x28] sm:$0xff]
        %v295 = vld [vmem:[%s225 + $0x30] sm:$0xff]
        %v296 = vld [vmem:[%s225 + $0x38] sm:$0xff]
        %v297 = vadd.f32 %v289, %v290
        %298 = vadd.xlane.f32.xlu0 %v297
        %v299 = vpop.xlane.xlu0 %298
        %v300 = vadd.f32 %v291, %v292
        %301 = vadd.xlane.f32.xlu0 %v300
        %v302 = vpop.xlane.xlu0 %301
        %v303 = vadd.f32 %v293, %v294
        %304 = vadd.xlane.f32.xlu0 %v303
        %v305 = vpop.xlane.xlu0 %304
        %v306 = vadd.f32 %v295, %v296
        %307 = vadd.xlane.f32.xlu0 %v306
        %v308 = vpop.xlane.xlu0 %307
        %v309 = vrcp.pop 256.0
        %v310 = vmul.f32 %v299, %v309
        %v311 = vmul.f32 %v302, %v309
        %v312 = vmul.f32 %v305, %v309
        %v313 = vmul.f32 %v308, %v309
        %v314 = vmul.f32 %v310, %v285
        %v315 = vmul.f32 %v311, %v286
        %v316 = vmul.f32 %v312, %v287
        %v317 = vmul.f32 %v313, %v288
        %vm318 = vcmask 15360
        %v319 = vsel %vm318, %v314, 0.0
        %v320 = vsel %vm318, %v315, 0.0
        %v321 = vadd.f32 %v319, %v320
        %v322 = vsel %vm318, %v316, 0.0
        %v323 = vadd.f32 %v321, %v322
        %v324 = vsel %vm318, %v317, 0.0
        %v325 = vadd.f32 %v323, %v324
        %v326 = vrot.slane %v325, 4
        %v327 = vadd.f32 %v325, %v326
        %v328 = vrot.slane %v327, 2
        %v329 = vadd.f32 %v327, %v328
        %v330 = vrot.slane %v329, 1
        %v331 = vadd.f32 %v329, %v330
        %v332 = vld [vmem:[%s2] sm:$0x1]
        %v333 = vadd.f32 %v331, %v332
        %v334 = vmax.f32 %v333, 0.0
        %v335 = vlaneseq
        %v336 = vshrl.u32 %v335, 7
        %v337 = vsub.s32 0, %v336
        %v338 = vrot.slane %v334, %v337
        %343 = vrot.lane.b32.xlu0 %v285, 126
        %v344 = vpop.permute.xlu0 %343
        %345 = vrot.lane.b32.xlu0 %v286, 126
        %v346 = vpop.permute.xlu0 %345
        %347 = vrot.lane.b32.xlu0 %v287, 126
        %v348 = vpop.permute.xlu0 %347
        %349 = vrot.lane.b32.xlu0 %v288, 126
        %v350 = vpop.permute.xlu0 %349
        %v355 = vmul.f32 %v338, %v344
        %v356 = vmul.f32 %v338, %v346
        %v357 = vmul.f32 %v338, %v348
        %v358 = vmul.f32 %v338, %v350
        %v359 = vsel %vm318, %v355, 0.0
        %360 = vadd.xlane.f32.xlu0 %v359
        %v361 = vpop.xlane.xlu0 %360
        %v362 = vsel %vm318, %v356, 0.0
        %363 = vadd.xlane.f32.xlu0 %v362
        %v364 = vpop.xlane.xlu0 %363
        %v365 = vsel %vm318, %v357, 0.0
        %366 = vadd.xlane.f32.xlu0 %v365
        %v367 = vpop.xlane.xlu0 %366
        %v368 = vsel %vm318, %v358, 0.0
        %369 = vadd.xlane.f32.xlu0 %v368
        %v370 = vpop.xlane.xlu0 %369
        %v371 = vadd.f32 %v361, %v285
        %v372 = vadd.f32 %v364, %v286
        %v373 = vadd.f32 %v367, %v287
        %v374 = vadd.f32 %v370, %v288
        %v375 = vxor.u32 %v371, 2147483648
        %v376 = vxor.u32 %v372, 2147483648
        %v377 = vxor.u32 %v373, 2147483648
        %v378 = vxor.u32 %v374, 2147483648
        %v379 = vmul.f32 %v375, 1.442695
        %v380 = vpow.pop %v379
        %v381 = vmul.f32 %v376, 1.442695
        %v382 = vpow.pop %v381
        %v383 = vmul.f32 %v377, 1.442695
        %v384 = vpow.pop %v383
        %v385 = vmul.f32 %v378, 1.442695
        %v386 = vpow.pop %v385
        %v387 = vadd.f32 %v380, 1.0
        %v388 = vadd.f32 %v382, 1.0
        %v389 = vadd.f32 %v384, 1.0
        %v390 = vadd.f32 %v386, 1.0
        %v391 = vrcp.pop %v387
        %v392 = vmul.f32 1.0, %v391
        %v393 = vrcp.pop %v388
        %v394 = vmul.f32 1.0, %v393
        %v395 = vrcp.pop %v389
        %v396 = vmul.f32 1.0, %v395
        %v397 = vrcp.pop %v390
        %v398 = vmul.f32 1.0, %v397
        %399 = vset.pattern.permute.xlu0 5
        %400 = vperm.xlu0 %399, %v285
        %v401 = vpop.permute.xlu0 %400
        %403 = vset.pattern.permute.xlu0 5
        %404 = vperm.xlu0 %403, %v286
        %v405 = vpop.permute.xlu0 %404
        %407 = vset.pattern.permute.xlu0 5
        %408 = vperm.xlu0 %407, %v287
        %v409 = vpop.permute.xlu0 %408
        %411 = vset.pattern.permute.xlu0 5
        %412 = vperm.xlu0 %411, %v288
        %v413 = vpop.permute.xlu0 %412
        %v415 = vmul.f32 %v289, %v401
        %v416 = vmul.f32 %v290, %v401
        %v417 = vmul.f32 %v291, %v405
        %v418 = vmul.f32 %v292, %v405
        %v419 = vmul.f32 %v293, %v409
        %v420 = vmul.f32 %v294, %v409
        %v421 = vmul.f32 %v295, %v413
        %v422 = vmul.f32 %v296, %v413
        %v423 = vadd.f32 %v415, %v417
        %v424 = vadd.f32 %v423, %v419
        %v425 = vadd.f32 %v424, %v421
        %v426 = vrot.slane %v425, 4
        %v427 = vadd.f32 %v425, %v426
        %v428 = vrot.slane %v427, 2
        %v429 = vadd.f32 %v427, %v428
        %v430 = vrot.slane %v429, 1
        %v431 = vadd.f32 %v429, %v430
        %v432 = vadd.f32 %v416, %v418
        %v433 = vadd.f32 %v432, %v420
        %v434 = vadd.f32 %v433, %v422
        %v435 = vrot.slane %v434, 4
        %v436 = vadd.f32 %v434, %v435
        %v437 = vrot.slane %v436, 2
        %v438 = vadd.f32 %v436, %v437
        %v439 = vrot.slane %v438, 1
        %v440 = vadd.f32 %v438, %v439
        %s441 = sld [smem:[#allocation6]]
        %v442 = vstv %s441
        %v443 = vadd.f32 %v431, %v442
        %v444 = vadd.f32 %v440, %v442
        %v448 = vcombine.low 0.0, %v443
        %v450 = vunpack.c.l.s4 1966171168
        %v451 = vunpack.c.0.s8 %v450
        %v452 = vlaneseq
        %v453 = vshrl.u32 %v452, 7
        %v454 = vsub.s32 %v451, %v453
        %v455 = vrot.slane %v448, %v454
        %v457 = vunpack.c.l.s4 1966171168
        %v458 = vunpack.c.0.s8 %v457
        %v459 = vlaneseq
        %v460 = vshrl.u32 %v459, 7
        %v461 = vsub.s32 %v458, %v460
        %v462 = vrot.slane %v444, %v461
        %v463 = vcombine.low %v455, %v462
        %v465 = vunpack.c.l.s4 1966171168
        %v466 = vunpack.c.0.s8 %v465
        %v467 = vlaneseq
        %v468 = vshrl.u32 %v467, 7
        %v469 = vsub.s32 %v466, %v468
        %v470 = vrot.slane %v463, %v469
        %471 = vrot.lane.b32.xlu0 %v470, 51
        %v472 = vpop.permute.xlu0 %471
        %v473 = vrot.slane %v472, 1
        %vm474 = vcmask 416768
        %v475 = vsel %vm474, %v472, %v473
        %v477 = vsel %vm261, %v475, 0.0
        %478 = vrot.lane.b32.xlu0 %v470, 50
        %v479 = vpop.permute.xlu0 %478
        %v480 = vrot.slane %v479, 1
        %vm481 = vcmask 408576
        %v482 = vsel %vm481, %v479, %v480
        %v484 = vsel %vm265, %v482, 0.0
        %485 = vrot.lane.b32.xlu0 %v470, 49
        %v486 = vpop.permute.xlu0 %485
        %v487 = vrot.slane %v486, 1
        %vm488 = vcmask 400384
        %v489 = vsel %vm488, %v486, %v487
        %v491 = vsel %vm269, %v489, 0.0
        %492 = vrot.lane.b32.xlu0 %v470, 48
        %v493 = vpop.permute.xlu0 %492
        %v494 = vrot.slane %v493, 1
        %vm495 = vcmask 392192
        %v496 = vsel %vm495, %v493, %v494
        %v498 = vsel %vm272, %v496, 0.0
        %499 = vrot.lane.b32.xlu0 %v470, 47
        %v500 = vpop.permute.xlu0 %499
        %v501 = vrot.slane %v500, 1
        %vm502 = vcmask 384000
        %v503 = vsel %vm502, %v500, %v501
        %v505 = vsel %vm276, %v503, 0.0
        %506 = vrot.lane.b32.xlu0 %v470, 46
        %v507 = vpop.permute.xlu0 %506
        %v508 = vrot.slane %v507, 1
        %vm509 = vcmask 375808
        %v510 = vsel %vm509, %v507, %v508
        %v512 = vsel %vm280, %v510, 0.0
        %513 = vrot.lane.b32.xlu0 %v470, 45
        %v514 = vpop.permute.xlu0 %513
        %v515 = vrot.slane %v514, 1
        %vm516 = vcmask 367616
        %v517 = vsel %vm516, %v514, %v515
        %v519 = vsel %vm284, %v517, 0.0
        %520 = vrot.lane.b32.xlu0 %v470, 35
        %v521 = vpop.permute.xlu0 %520
        %v522 = vrot.slane %v521, 1
        %vm523 = vcmask 285696
        %v524 = vsel %vm523, %v521, %v522
        %v526 = vsel %vm261, %v524, 0.0
        %527 = vrot.lane.b32.xlu0 %v470, 34
        %v528 = vpop.permute.xlu0 %527
        %v529 = vrot.slane %v528, 1
        %vm530 = vcmask 277504
        %v531 = vsel %vm530, %v528, %v529
        %v533 = vsel %vm265, %v531, 0.0
        %534 = vrot.lane.b32.xlu0 %v470, 33
        %v535 = vpop.permute.xlu0 %534
        %v536 = vrot.slane %v535, 1
        %vm537 = vcmask 269312
        %v538 = vsel %vm537, %v535, %v536
        %v540 = vsel %vm269, %v538, 0.0
        %541 = vrot.lane.b32.xlu0 %v470, 32
        %v542 = vpop.permute.xlu0 %541
        %v543 = vrot.slane %v542, 1
        %vm544 = vcmask 261120
        %v545 = vsel %vm544, %v542, %v543
        %v547 = vsel %vm272, %v545, 0.0
        %548 = vrot.lane.b32.xlu0 %v470, 31
        %v549 = vpop.permute.xlu0 %548
        %v550 = vrot.slane %v549, 1
        %vm551 = vcmask 252928
        %v552 = vsel %vm551, %v549, %v550
        %v554 = vsel %vm276, %v552, 0.0
        %555 = vrot.lane.b32.xlu0 %v470, 30
        %v556 = vpop.permute.xlu0 %555
        %v557 = vrot.slane %v556, 1
        %vm558 = vcmask 244736
        %v559 = vsel %vm558, %v556, %v557
        %v561 = vsel %vm280, %v559, 0.0
        %562 = vrot.lane.b32.xlu0 %v470, 29
        %v563 = vpop.permute.xlu0 %562
        %v564 = vrot.slane %v563, 1
        %vm565 = vcmask 236544
        %v566 = vsel %vm565, %v563, %v564
        %v568 = vsel %vm284, %v566, 0.0
        %569 = vrot.lane.b32.xlu0 %v470, 19
        %v570 = vpop.permute.xlu0 %569
        %v571 = vrot.slane %v570, 1
        %vm572 = vcmask 154624
        %v573 = vsel %vm572, %v570, %v571
        %v575 = vsel %vm261, %v573, 0.0
        %576 = vrot.lane.b32.xlu0 %v470, 18
        %v577 = vpop.permute.xlu0 %576
        %v578 = vrot.slane %v577, 1
        %vm579 = vcmask 146432
        %v580 = vsel %vm579, %v577, %v578
        %v582 = vsel %vm265, %v580, 0.0
        %583 = vrot.lane.b32.xlu0 %v470, 17
        %v584 = vpop.permute.xlu0 %583
        %v585 = vrot.slane %v584, 1
        %vm586 = vcmask 138240
        %v587 = vsel %vm586, %v584, %v585
        %v589 = vsel %vm269, %v587, 0.0
        %590 = vrot.lane.b32.xlu0 %v470, 16
        %v591 = vpop.permute.xlu0 %590
        %v592 = vrot.slane %v591, 1
        %vm593 = vcmask 130048
        %v594 = vsel %vm593, %v591, %v592
        %v596 = vsel %vm272, %v594, 0.0
        %597 = vrot.lane.b32.xlu0 %v470, 15
        %v598 = vpop.permute.xlu0 %597
        %v599 = vrot.slane %v598, 1
        %vm600 = vcmask 121856
        %v601 = vsel %vm600, %v598, %v599
        %v603 = vsel %vm276, %v601, 0.0
        %604 = vrot.lane.b32.xlu0 %v470, 14
        %v605 = vpop.permute.xlu0 %604
        %v606 = vrot.slane %v605, 1
        %vm607 = vcmask 113664
        %v608 = vsel %vm607, %v605, %v606
        %v610 = vsel %vm280, %v608, 0.0
        %611 = vrot.lane.b32.xlu0 %v470, 13
        %v612 = vpop.permute.xlu0 %611
        %v613 = vrot.slane %v612, 1
        %vm614 = vcmask 105472
        %v615 = vsel %vm614, %v612, %v613
        %v617 = vsel %vm284, %v615, 0.0
        %618 = vrot.lane.b32.xlu0 %v470, 3
        %v619 = vpop.permute.xlu0 %618
        %v620 = vrot.slane %v619, 1
        %vm621 = vcmask 23552
        %v622 = vsel %vm621, %v619, %v620
        %v624 = vsel %vm261, %v622, 0.0
        %625 = vrot.lane.b32.xlu0 %v470, 2
        %v626 = vpop.permute.xlu0 %625
        %v627 = vrot.slane %v626, 1
        %v628 = vsel %vm318, %v626, %v627
        %v630 = vsel %vm265, %v628, 0.0
        %631 = vrot.lane.b32.xlu0 %v470, 1
        %v632 = vpop.permute.xlu0 %631
        %v633 = vrot.slane %v632, 1
        %vm634 = vcmask 7168
        %v635 = vsel %vm634, %v632, %v633
        %v637 = vsel %vm269, %v635, 0.0
        %v638 = vcombine.low %v443, %v444
        %v640 = vunpack.c.l.s4 1966171168
        %v641 = vunpack.c.0.s8 %v640
        %v642 = vlaneseq
        %v643 = vshrl.u32 %v642, 7
        %v644 = vsub.s32 %v641, %v643
        %v645 = vrot.slane %v638, %v644
        %v647 = vunpack.c.l.s4 1966171168
        %v648 = vunpack.c.0.s8 %v647
        %v649 = vlaneseq
        %v650 = vshrl.u32 %v649, 7
        %v651 = vsub.s32 %v648, %v650
        %v652 = vrot.slane %v645, %v651
        %v654 = vsel %vm272, %v652, 0.0
        %v656 = vunpack.c.l.s4 1966171168
        %v657 = vunpack.c.0.s8 %v656
        %v658 = vlaneseq
        %v659 = vshrl.u32 %v658, 7
        %v660 = vsub.s32 %v657, %v659
        %v661 = vrot.slane 0.0, %v660
        %v662 = vcombine.low %v645, %v661
        %v664 = vunpack.c.l.s4 1966171168
        %v665 = vunpack.c.0.s8 %v664
        %v666 = vlaneseq
        %v667 = vshrl.u32 %v666, 7
        %v668 = vsub.s32 %v665, %v667
        %v669 = vrot.slane %v662, %v668
        %670 = vrot.lane.b32.xlu0 %v669, 127
        %v671 = vpop.permute.xlu0 %670
        %v672 = vrot.slane %v671, 1
        %vm673 = vcmask 1039360
        %v674 = vsel %vm673, %v671, %v672
        %v676 = vsel %vm276, %v674, 0.0
        %677 = vrot.lane.b32.xlu0 %v669, 126
        %v678 = vpop.permute.xlu0 %677
        %v679 = vrot.slane %v678, 1
        %vm680 = vcmask 1031168
        %v681 = vsel %vm680, %v678, %v679
        %v683 = vsel %vm280, %v681, 0.0
        %684 = vrot.lane.b32.xlu0 %v669, 125
        %v685 = vpop.permute.xlu0 %684
        %v686 = vrot.slane %v685, 1
        %vm687 = vcmask 1022976
        %v688 = vsel %vm687, %v685, %v686
        %v690 = vsel %vm284, %v688, 0.0
        %691 = vrot.lane.b32.xlu0 %v669, 115
        %v692 = vpop.permute.xlu0 %691
        %v693 = vrot.slane %v692, 1
        %vm694 = vcmask 941056
        %v695 = vsel %vm694, %v692, %v693
        %v697 = vsel %vm261, %v695, 0.0
        %698 = vrot.lane.b32.xlu0 %v669, 114
        %v699 = vpop.permute.xlu0 %698
        %v700 = vrot.slane %v699, 1
        %vm701 = vcmask 932864
        %v702 = vsel %vm701, %v699, %v700
        %v704 = vsel %vm265, %v702, 0.0
        %705 = vrot.lane.b32.xlu0 %v669, 113
        %v706 = vpop.permute.xlu0 %705
        %v707 = vrot.slane %v706, 1
        %vm708 = vcmask 924672
        %v709 = vsel %vm708, %v706, %v707
        %v711 = vsel %vm269, %v709, 0.0
        %712 = vrot.lane.b32.xlu0 %v669, 112
        %v713 = vpop.permute.xlu0 %712
        %v714 = vrot.slane %v713, 1
        %vm715 = vcmask 916480
        %v716 = vsel %vm715, %v713, %v714
        %v718 = vsel %vm272, %v716, 0.0
        %719 = vrot.lane.b32.xlu0 %v669, 111
        %v720 = vpop.permute.xlu0 %719
        %v721 = vrot.slane %v720, 1
        %vm722 = vcmask 908288
        %v723 = vsel %vm722, %v720, %v721
        %v725 = vsel %vm276, %v723, 0.0
        %726 = vrot.lane.b32.xlu0 %v669, 110
        %v727 = vpop.permute.xlu0 %726
        %v728 = vrot.slane %v727, 1
        %vm729 = vcmask 900096
        %v730 = vsel %vm729, %v727, %v728
        %v732 = vsel %vm280, %v730, 0.0
        %733 = vrot.lane.b32.xlu0 %v669, 109
        %v734 = vpop.permute.xlu0 %733
        %v735 = vrot.slane %v734, 1
        %vm736 = vcmask 891904
        %v737 = vsel %vm736, %v734, %v735
        %v739 = vsel %vm284, %v737, 0.0
        %740 = vrot.lane.b32.xlu0 %v669, 99
        %v741 = vpop.permute.xlu0 %740
        %v742 = vrot.slane %v741, 1
        %vm743 = vcmask 809984
        %v744 = vsel %vm743, %v741, %v742
        %v746 = vsel %vm261, %v744, 0.0
        %747 = vrot.lane.b32.xlu0 %v669, 98
        %v748 = vpop.permute.xlu0 %747
        %v749 = vrot.slane %v748, 1
        %vm750 = vcmask 801792
        %v751 = vsel %vm750, %v748, %v749
        %v753 = vsel %vm265, %v751, 0.0
        %754 = vrot.lane.b32.xlu0 %v669, 97
        %v755 = vpop.permute.xlu0 %754
        %v756 = vrot.slane %v755, 1
        %vm757 = vcmask 793600
        %v758 = vsel %vm757, %v755, %v756
        %v760 = vsel %vm269, %v758, 0.0
        %761 = vrot.lane.b32.xlu0 %v669, 96
        %v762 = vpop.permute.xlu0 %761
        %v763 = vrot.slane %v762, 1
        %vm764 = vcmask 785408
        %v765 = vsel %vm764, %v762, %v763
        %v767 = vsel %vm272, %v765, 0.0
        %768 = vrot.lane.b32.xlu0 %v669, 95
        %v769 = vpop.permute.xlu0 %768
        %v770 = vrot.slane %v769, 1
        %vm771 = vcmask 777216
        %v772 = vsel %vm771, %v769, %v770
        %v774 = vsel %vm276, %v772, 0.0
        %775 = vrot.lane.b32.xlu0 %v669, 94
        %v776 = vpop.permute.xlu0 %775
        %v777 = vrot.slane %v776, 1
        %vm778 = vcmask 769024
        %v779 = vsel %vm778, %v776, %v777
        %v781 = vsel %vm280, %v779, 0.0
        %782 = vrot.lane.b32.xlu0 %v669, 93
        %v783 = vpop.permute.xlu0 %782
        %v784 = vrot.slane %v783, 1
        %vm785 = vcmask 760832
        %v786 = vsel %vm785, %v783, %v784
        %v788 = vsel %vm284, %v786, 0.0
        %789 = vrot.lane.b32.xlu0 %v669, 83
        %v790 = vpop.permute.xlu0 %789
        %v791 = vrot.slane %v790, 1
        %vm792 = vcmask 678912
        %v793 = vsel %vm792, %v790, %v791
        %v795 = vsel %vm261, %v793, 0.0
        %796 = vrot.lane.b32.xlu0 %v669, 82
        %v797 = vpop.permute.xlu0 %796
        %v798 = vrot.slane %v797, 1
        %vm799 = vcmask 670720
        %v800 = vsel %vm799, %v797, %v798
        %v802 = vsel %vm265, %v800, 0.0
        %803 = vrot.lane.b32.xlu0 %v669, 81
        %v804 = vpop.permute.xlu0 %803
        %v805 = vrot.slane %v804, 1
        %vm806 = vcmask 662528
        %v807 = vsel %vm806, %v804, %v805
        %v809 = vsel %vm269, %v807, 0.0
        %810 = vrot.lane.b32.xlu0 %v669, 80
        %v811 = vpop.permute.xlu0 %810
        %v812 = vrot.slane %v811, 1
        %vm813 = vcmask 654336
        %v814 = vsel %vm813, %v811, %v812
        %v816 = vsel %vm272, %v814, 0.0
        %817 = vrot.lane.b32.xlu0 %v669, 79
        %v818 = vpop.permute.xlu0 %817
        %v819 = vrot.slane %v818, 1
        %vm820 = vcmask 646144
        %v821 = vsel %vm820, %v818, %v819
        %v823 = vsel %vm276, %v821, 0.0
        %824 = vrot.lane.b32.xlu0 %v669, 78
        %v825 = vpop.permute.xlu0 %824
        %v826 = vrot.slane %v825, 1
        %vm827 = vcmask 637952
        %v828 = vsel %vm827, %v825, %v826
        %v830 = vsel %vm280, %v828, 0.0
        %831 = vrot.lane.b32.xlu0 %v669, 77
        %v832 = vpop.permute.xlu0 %831
        %v833 = vrot.slane %v832, 1
        %vm834 = vcmask 629760
        %v835 = vsel %vm834, %v832, %v833
        %v837 = vsel %vm284, %v835, 0.0
        %s838 = sld [smem:[#allocation6 + $0x4]]
        %v839 = vstv %s838
        %v840 = vmul.f32 %v839, %v589
        %v841 = vadd.f32 %v840, 0.0
        %s842 = sld [smem:[#allocation6 + $0x5]]
        %v843 = vstv %s842
        %v844 = vmul.f32 %v843, %v596
        %v845 = vadd.f32 %v841, %v844
        %s846 = sld [smem:[#allocation6 + $0x6]]
        %v847 = vstv %s846
        %v848 = vmul.f32 %v847, %v603
        %v849 = vadd.f32 %v845, %v848
        %s850 = sld [smem:[#allocation6 + $0x7]]
        %v851 = vstv %s850
        %v852 = vmul.f32 %v851, %v637
        %v853 = vadd.f32 %v849, %v852
        %s854 = sld [smem:[#allocation6 + $0x8]]
        %v855 = vstv %s854
        %v856 = vmul.f32 %v855, %v654
        %v857 = vadd.f32 %v853, %v856
        %s858 = sld [smem:[#allocation6 + $0x9]]
        %v859 = vstv %s858
        %v860 = vmul.f32 %v859, %v676
        %v861 = vadd.f32 %v857, %v860
        %s862 = sld [smem:[#allocation6 + $0xa]]
        %v863 = vstv %s862
        %v864 = vmul.f32 %v863, %v711
        %v865 = vadd.f32 %v861, %v864
        %s866 = sld [smem:[#allocation6 + $0xb]]
        %v867 = vstv %s866
        %v868 = vmul.f32 %v867, %v718
        %v869 = vadd.f32 %v865, %v868
        %s870 = sld [smem:[#allocation6 + $0xc]]
        %v871 = vstv %s870
        %v872 = vmul.f32 %v871, %v725
        %v873 = vadd.f32 %v869, %v872
        %s874 = sld [smem:[#allocation6 + $0x1]]
        %v875 = vstv %s874
        %v876 = vadd.f32 %v873, %v875
        %s877 = sld [smem:[#allocation6 + $0xd]]
        %v878 = vstv %s877
        %v879 = vmul.f32 %v878, %v533
        %v880 = vadd.f32 %v879, 0.0
        %s881 = sld [smem:[#allocation6 + $0xe]]
        %v882 = vstv %s881
        %v883 = vmul.f32 %v882, %v540
        %v884 = vadd.f32 %v880, %v883
        %s885 = sld [smem:[#allocation6 + $0xf]]
        %v886 = vstv %s885
        %v887 = vmul.f32 %v886, %v547
        %v888 = vadd.f32 %v884, %v887
        %s889 = sld [smem:[#allocation6 + $0x10]]
        %v890 = vstv %s889
        %v891 = vmul.f32 %v890, %v554
        %v892 = vadd.f32 %v888, %v891
        %s893 = sld [smem:[#allocation6 + $0x11]]
        %v894 = vstv %s893
        %v895 = vmul.f32 %v894, %v561
        %v896 = vadd.f32 %v892, %v895
        %s897 = sld [smem:[#allocation6 + $0x12]]
        %v898 = vstv %s897
        %v899 = vmul.f32 %v898, %v582
        %v900 = vadd.f32 %v896, %v899
        %s901 = sld [smem:[#allocation6 + $0x13]]
        %v902 = vstv %s901
        %v903 = vmul.f32 %v902, %v589
        %v904 = vadd.f32 %v900, %v903
        %s905 = sld [smem:[#allocation6 + $0x14]]
        %v906 = vstv %s905
        %v907 = vmul.f32 %v906, %v596
        %v908 = vadd.f32 %v904, %v907
        %s909 = sld [smem:[#allocation6 + $0x15]]
        %v910 = vstv %s909
        %v911 = vmul.f32 %v910, %v603
        %v912 = vadd.f32 %v908, %v911
        %s913 = sld [smem:[#allocation6 + $0x16]]
        %v914 = vstv %s913
        %v915 = vmul.f32 %v914, %v610
        %v916 = vadd.f32 %v912, %v915
        %s917 = sld [smem:[#allocation6 + $0x17]]
        %v918 = vstv %s917
        %v919 = vmul.f32 %v918, %v630
        %v920 = vadd.f32 %v916, %v919
        %s921 = sld [smem:[#allocation6 + $0x18]]
        %v922 = vstv %s921
        %v923 = vmul.f32 %v922, %v637
        %v924 = vadd.f32 %v920, %v923
        %s925 = sld [smem:[#allocation6 + $0x19]]
        %v926 = vstv %s925
        %v927 = vmul.f32 %v926, %v654
        %v928 = vadd.f32 %v924, %v927
        %s929 = sld [smem:[#allocation6 + $0x1a]]
        %v930 = vstv %s929
        %v931 = vmul.f32 %v930, %v676
        %v932 = vadd.f32 %v928, %v931
        %s933 = sld [smem:[#allocation6 + $0x1b]]
        %v934 = vstv %s933
        %v935 = vmul.f32 %v934, %v683
        %v936 = vadd.f32 %v932, %v935
        %s937 = sld [smem:[#allocation6 + $0x1c]]
        %v938 = vstv %s937
        %v939 = vmul.f32 %v938, %v704
        %v940 = vadd.f32 %v936, %v939
        %s941 = sld [smem:[#allocation6 + $0x1d]]
        %v942 = vstv %s941
        %v943 = vmul.f32 %v942, %v711
        %v944 = vadd.f32 %v940, %v943
        %s945 = sld [smem:[#allocation6 + $0x1e]]
        %v946 = vstv %s945
        %v947 = vmul.f32 %v946, %v718
        %v948 = vadd.f32 %v944, %v947
        %s949 = sld [smem:[#allocation6 + $0x1f]]
        %v950 = vstv %s949
        %v951 = vmul.f32 %v950, %v725
        %v952 = vadd.f32 %v948, %v951
        %s953 = sld [smem:[#allocation6 + $0x20]]
        %v954 = vstv %s953
        %v955 = vmul.f32 %v954, %v732
        %v956 = vadd.f32 %v952, %v955
        %s957 = sld [smem:[#allocation6 + $0x21]]
        %v958 = vstv %s957
        %v959 = vmul.f32 %v958, %v753
        %v960 = vadd.f32 %v956, %v959
        %s961 = sld [smem:[#allocation6 + $0x22]]
        %v962 = vstv %s961
        %v963 = vmul.f32 %v962, %v760
        %v964 = vadd.f32 %v960, %v963
        %s965 = sld [smem:[#allocation6 + $0x23]]
        %v966 = vstv %s965
        %v967 = vmul.f32 %v966, %v767
        %v968 = vadd.f32 %v964, %v967
        %s969 = sld [smem:[#allocation6 + $0x24]]
        %v970 = vstv %s969
        %v971 = vmul.f32 %v970, %v774
        %v972 = vadd.f32 %v968, %v971
        %s973 = sld [smem:[#allocation6 + $0x25]]
        %v974 = vstv %s973
        %v975 = vmul.f32 %v974, %v781
        %v976 = vadd.f32 %v972, %v975
        %s977 = sld [smem:[#allocation6 + $0x2]]
        %v978 = vstv %s977
        %v979 = vadd.f32 %v976, %v978
        %v980 = vadd.f32 %v876, %v979
        %s981 = sld [smem:[#allocation6 + $0x26]]
        %v982 = vstv %s981
        %v983 = vmul.f32 %v982, %v477
        %v984 = vadd.f32 %v983, 0.0
        %s985 = sld [smem:[#allocation6 + $0x27]]
        %v986 = vstv %s985
        %v987 = vmul.f32 %v986, %v484
        %v988 = vadd.f32 %v984, %v987
        %s989 = sld [smem:[#allocation6 + $0x28]]
        %v990 = vstv %s989
        %v991 = vmul.f32 %v990, %v491
        %v992 = vadd.f32 %v988, %v991
        %s993 = sld [smem:[#allocation6 + $0x29]]
        %v994 = vstv %s993
        %v995 = vmul.f32 %v994, %v498
        %v996 = vadd.f32 %v992, %v995
        %s997 = sld [smem:[#allocation6 + $0x2a]]
        %v998 = vstv %s997
        %v999 = vmul.f32 %v998, %v505
        %v1000 = vadd.f32 %v996, %v999
        %s1001 = sld [smem:[#allocation6 + $0x2b]]
        %v1002 = vstv %s1001
        %v1003 = vmul.f32 %v1002, %v512
        %v1004 = vadd.f32 %v1000, %v1003
        %s1005 = sld [smem:[#allocation6 + $0x2c]]
        %v1006 = vstv %s1005
        %v1007 = vmul.f32 %v1006, %v519
        %v1008 = vadd.f32 %v1004, %v1007
        %s1009 = sld [smem:[#allocation6 + $0x2d]]
        %v1010 = vstv %s1009
        %v1011 = vmul.f32 %v1010, %v526
        %v1012 = vadd.f32 %v1008, %v1011
        %s1013 = sld [smem:[#allocation6 + $0x2e]]
        %v1014 = vstv %s1013
        %v1015 = vmul.f32 %v1014, %v533
        %v1016 = vadd.f32 %v1012, %v1015
        %s1017 = sld [smem:[#allocation6 + $0x2f]]
        %v1018 = vstv %s1017
        %v1019 = vmul.f32 %v1018, %v540
        %v1020 = vadd.f32 %v1016, %v1019
        %s1021 = sld [smem:[#allocation6 + $0x30]]
        %v1022 = vstv %s1021
        %v1023 = vmul.f32 %v1022, %v547
        %v1024 = vadd.f32 %v1020, %v1023
        %s1025 = sld [smem:[#allocation6 + $0x31]]
        %v1026 = vstv %s1025
        %v1027 = vmul.f32 %v1026, %v554
        %v1028 = vadd.f32 %v1024, %v1027
        %s1029 = sld [smem:[#allocation6 + $0x32]]
        %v1030 = vstv %s1029
        %v1031 = vmul.f32 %v1030, %v561
        %v1032 = vadd.f32 %v1028, %v1031
        %s1033 = sld [smem:[#allocation6 + $0x33]]
        %v1034 = vstv %s1033
        %v1035 = vmul.f32 %v1034, %v568
        %v1036 = vadd.f32 %v1032, %v1035
        %s1037 = sld [smem:[#allocation6 + $0x34]]
        %v1038 = vstv %s1037
        %v1039 = vmul.f32 %v1038, %v575
        %v1040 = vadd.f32 %v1036, %v1039
        %s1041 = sld [smem:[#allocation6 + $0x35]]
        %v1042 = vstv %s1041
        %v1043 = vmul.f32 %v1042, %v582
        %v1044 = vadd.f32 %v1040, %v1043
        %s1045 = sld [smem:[#allocation6 + $0x36]]
        %v1046 = vstv %s1045
        %v1047 = vmul.f32 %v1046, %v589
        %v1048 = vadd.f32 %v1044, %v1047
        %s1049 = sld [smem:[#allocation6 + $0x37]]
        %v1050 = vstv %s1049
        %v1051 = vmul.f32 %v1050, %v596
        %v1052 = vadd.f32 %v1048, %v1051
        %s1053 = sld [smem:[#allocation6 + $0x38]]
        %v1054 = vstv %s1053
        %v1055 = vmul.f32 %v1054, %v603
        %v1056 = vadd.f32 %v1052, %v1055
        %s1057 = sld [smem:[#allocation6 + $0x39]]
        %v1058 = vstv %s1057
        %v1059 = vmul.f32 %v1058, %v610
        %v1060 = vadd.f32 %v1056, %v1059
        %s1061 = sld [smem:[#allocation6 + $0x3a]]
        %v1062 = vstv %s1061
        %v1063 = vmul.f32 %v1062, %v617
        %v1064 = vadd.f32 %v1060, %v1063
        %s1065 = sld [smem:[#allocation6 + $0x3b]]
        %v1066 = vstv %s1065
        %v1067 = vmul.f32 %v1066, %v624
        %v1068 = vadd.f32 %v1064, %v1067
        %s1069 = sld [smem:[#allocation6 + $0x3c]]
        %v1070 = vstv %s1069
        %v1071 = vmul.f32 %v1070, %v630
        %v1072 = vadd.f32 %v1068, %v1071
        %s1073 = sld [smem:[#allocation6 + $0x3d]]
        %v1074 = vstv %s1073
        %v1075 = vmul.f32 %v1074, %v637
        %v1076 = vadd.f32 %v1072, %v1075
        %s1077 = sld [smem:[#allocation6 + $0x3e]]
        %v1078 = vstv %s1077
        %v1079 = vmul.f32 %v1078, %v654
        %v1080 = vadd.f32 %v1076, %v1079
        %s1081 = sld [smem:[#allocation6 + $0x3f]]
        %v1082 = vstv %s1081
        %v1083 = vmul.f32 %v1082, %v676
        %v1084 = vadd.f32 %v1080, %v1083
        %s1085 = sld [smem:[#allocation6 + $0x40]]
        %v1086 = vstv %s1085
        %v1087 = vmul.f32 %v1086, %v683
        %v1088 = vadd.f32 %v1084, %v1087
        %s1089 = sld [smem:[#allocation6 + $0x41]]
        %v1090 = vstv %s1089
        %v1091 = vmul.f32 %v1090, %v690
        %v1092 = vadd.f32 %v1088, %v1091
        %s1093 = sld [smem:[#allocation6 + $0x42]]
        %v1094 = vstv %s1093
        %v1095 = vmul.f32 %v1094, %v697
        %v1096 = vadd.f32 %v1092, %v1095
        %s1097 = sld [smem:[#allocation6 + $0x43]]
        %v1098 = vstv %s1097
        %v1099 = vmul.f32 %v1098, %v704
        %v1100 = vadd.f32 %v1096, %v1099
        %s1101 = sld [smem:[#allocation6 + $0x44]]
        %v1102 = vstv %s1101
        %v1103 = vmul.f32 %v1102, %v711
        %v1104 = vadd.f32 %v1100, %v1103
        %s1105 = sld [smem:[#allocation6 + $0x45]]
        %v1106 = vstv %s1105
        %v1107 = vmul.f32 %v1106, %v718
        %v1108 = vadd.f32 %v1104, %v1107
        %s1109 = sld [smem:[#allocation6 + $0x46]]
        %v1110 = vstv %s1109
        %v1111 = vmul.f32 %v1110, %v725
        %v1112 = vadd.f32 %v1108, %v1111
        %s1113 = sld [smem:[#allocation6 + $0x47]]
        %v1114 = vstv %s1113
        %v1115 = vmul.f32 %v1114, %v732
        %v1116 = vadd.f32 %v1112, %v1115
        %s1117 = sld [smem:[#allocation6 + $0x48]]
        %v1118 = vstv %s1117
        %v1119 = vmul.f32 %v1118, %v739
        %v1120 = vadd.f32 %v1116, %v1119
        %s1121 = sld [smem:[#allocation6 + $0x49]]
        %v1122 = vstv %s1121
        %v1123 = vmul.f32 %v1122, %v746
        %v1124 = vadd.f32 %v1120, %v1123
        %s1125 = sld [smem:[#allocation6 + $0x4a]]
        %v1126 = vstv %s1125
        %v1127 = vmul.f32 %v1126, %v753
        %v1128 = vadd.f32 %v1124, %v1127
        %s1129 = sld [smem:[#allocation6 + $0x4b]]
        %v1130 = vstv %s1129
        %v1131 = vmul.f32 %v1130, %v760
        %v1132 = vadd.f32 %v1128, %v1131
        %s1133 = sld [smem:[#allocation6 + $0x4c]]
        %v1134 = vstv %s1133
        %v1135 = vmul.f32 %v1134, %v767
        %v1136 = vadd.f32 %v1132, %v1135
        %s1137 = sld [smem:[#allocation6 + $0x4d]]
        %v1138 = vstv %s1137
        %v1139 = vmul.f32 %v1138, %v774
        %v1140 = vadd.f32 %v1136, %v1139
        %s1141 = sld [smem:[#allocation6 + $0x4e]]
        %v1142 = vstv %s1141
        %v1143 = vmul.f32 %v1142, %v781
        %v1144 = vadd.f32 %v1140, %v1143
        %s1145 = sld [smem:[#allocation6 + $0x4f]]
        %v1146 = vstv %s1145
        %v1147 = vmul.f32 %v1146, %v788
        %v1148 = vadd.f32 %v1144, %v1147
        %s1149 = sld [smem:[#allocation6 + $0x50]]
        %v1150 = vstv %s1149
        %v1151 = vmul.f32 %v1150, %v795
        %v1152 = vadd.f32 %v1148, %v1151
        %s1153 = sld [smem:[#allocation6 + $0x51]]
        %v1154 = vstv %s1153
        %v1155 = vmul.f32 %v1154, %v802
        %v1156 = vadd.f32 %v1152, %v1155
        %s1157 = sld [smem:[#allocation6 + $0x52]]
        %v1158 = vstv %s1157
        %v1159 = vmul.f32 %v1158, %v809
        %v1160 = vadd.f32 %v1156, %v1159
        %s1161 = sld [smem:[#allocation6 + $0x53]]
        %v1162 = vstv %s1161
        %v1163 = vmul.f32 %v1162, %v816
        %v1164 = vadd.f32 %v1160, %v1163
        %s1165 = sld [smem:[#allocation6 + $0x54]]
        %v1166 = vstv %s1165
        %v1167 = vmul.f32 %v1166, %v823
        %v1168 = vadd.f32 %v1164, %v1167
        %s1169 = sld [smem:[#allocation6 + $0x55]]
        %v1170 = vstv %s1169
        %v1171 = vmul.f32 %v1170, %v830
        %v1172 = vadd.f32 %v1168, %v1171
        %s1173 = sld [smem:[#allocation6 + $0x56]]
        %v1174 = vstv %s1173
        %v1175 = vmul.f32 %v1174, %v837
        %v1176 = vadd.f32 %v1172, %v1175
        %s1177 = sld [smem:[#allocation6 + $0x3]]
        %v1178 = vstv %s1177
        %v1179 = vadd.f32 %v1176, %v1178
        %v1180 = vadd.f32 %v980, %v1179
        %v1181 = vxor.u32 %v1180, 2147483648
        %v1182 = vmul.f32 %v1181, 1.442695
        %v1183 = vpow.pop %v1182
        %v1184 = vadd.f32 %v1183, 1.0
        %v1185 = vrcp.pop %v1184
        %v1186 = vmul.f32 1.0, %v1185
        %v1188 = vlaneseq
        %v1189 = vshrl.u32 %v1188, 7
        %v1190 = vsub.s32 0, %v1189
        %v1191 = vrot.slane %v1186, %v1190
        %v1192 = vlaneseq
        %v1193 = vshrl.u32 %v1192, 7
        %v1194 = vsub.s32 1, %v1193
        %v1195 = vrot.slane %v1186, %v1194
        %v1198 = vmul.f32 %v1191, %v289
        %v1199 = vmul.f32 %v1195, %v290
        %v1200 = vmul.f32 %v1191, %v291
        %v1201 = vmul.f32 %v1195, %v292
        %v1202 = vmul.f32 %v1191, %v293
        %v1203 = vmul.f32 %v1195, %v294
        %v1204 = vmul.f32 %v1191, %v295
        %v1205 = vmul.f32 %v1195, %v296
        %1207 = vset.pattern.permute.xlu0 4
        %1208 = vperm.xlu0 %1207, %v392
        %v1209 = vpop.permute.xlu0 %1208
        %1212 = vset.pattern.permute.xlu0 4
        %1213 = vperm.xlu0 %1212, %v394
        %v1214 = vpop.permute.xlu0 %1213
        %1217 = vset.pattern.permute.xlu0 4
        %1218 = vperm.xlu0 %1217, %v396
        %v1219 = vpop.permute.xlu0 %1218
        %1222 = vset.pattern.permute.xlu0 4
        %1223 = vperm.xlu0 %1222, %v398
        %v1224 = vpop.permute.xlu0 %1223
        %v1226 = vmul.f32 %v289, %v1209
        %v1227 = vmul.f32 %v290, %v1209
        %v1228 = vmul.f32 %v291, %v1214
        %v1229 = vmul.f32 %v292, %v1214
        %v1230 = vmul.f32 %v293, %v1219
        %v1231 = vmul.f32 %v294, %v1219
        %v1232 = vmul.f32 %v295, %v1224
        %v1233 = vmul.f32 %v296, %v1224
        %v1234 = vmul.f32 %v1198, %v1226
        %v1235 = vmul.f32 %v1199, %v1227
        %v1236 = vmul.f32 %v1200, %v1228
        %v1237 = vmul.f32 %v1201, %v1229
        %v1238 = vmul.f32 %v1202, %v1230
        %v1239 = vmul.f32 %v1203, %v1231
        %v1240 = vmul.f32 %v1204, %v1232
        %v1241 = vmul.f32 %v1205, %v1233
        %1242 = vst [vmem:[%s256] sm:$0xff] %v1234
        %1243 = vst [vmem:[%s256 + $0x8] sm:$0xff] %v1235
        %1244 = vst [vmem:[%s256 + $0x10] sm:$0xff] %v1236
        %1245 = vst [vmem:[%s256 + $0x18] sm:$0xff] %v1237
        %1246 = vst [vmem:[%s256 + $0x20] sm:$0xff] %v1238
        %1247 = vst [vmem:[%s256 + $0x28] sm:$0xff] %v1239
        %1248 = vst [vmem:[%s256 + $0x30] sm:$0xff] %v1240
        %1249 = vst [vmem:[%s256 + $0x38] sm:$0xff] %v1241
        %s1250 = sand.u32 %s141, 1
        %s1251 = scalar_lea.sflag [#allocation4], %s1250
        %s1252 = sand.u32 %s141, 1
        %s1253 = smul.addr %s1252, 64
        %s1254 = scalar_lea.vmem [#allocation7], %s1253
        // Predicated region
        $region49: #{tpu_custom_call.1} parent=39 // pred_check
          %p1255 = pneg %p151
        $region50: #{tpu_custom_call.1} parent=39 // pred_check_branch
          %1257 = sbr.rel (%p1255) target = $region52
        $region51: #{tpu_custom_call.1} parent=39 // pred_region
          %s1259 = ssub.s32 1024, 1024
          %1260 = vsyncadd %s1251, %s1259
          %s1261 = smul.addr %s23, 8
          %s1262 = smul.addr %s1261, 128
          %s1263 = scalar_lea.hbm %s5, %s1262
          %s1264 = sshll.u32 %s1254, 4
          %s1265 = int_to_ptr.vmem [resolvable:$true] %s1264
          %1270 = dma.vmem_to_hbm [thread:$0]  %s1265, 1024, %s1263, %s1251, 256, 256, 16
        $region52: #{tpu_custom_call.1} parent=39 // pred_fallthru
          _
      $region40: #{tpu_custom_call.1} parent=5 // pred_fallthru
        _
      %p1271 = scmp.le.s32.totalorder 2, %s18
      // Predicated region
      $region53: #{tpu_custom_call.1} parent=5 // pred_check
        %p1272 = pneg %p1271
      $region54: #{tpu_custom_call.1} parent=5 // pred_check_branch
        %1274 = sbr.rel (%p1272) target = $region56
      $region55: #{tpu_custom_call.1} parent=5 // pred_region
        %s1275 = ssub.s32 %s18, 2
        // Predicated region
        $region57: #{tpu_custom_call.1} parent=55 // pred_check
          %p1276 = pneg %p157
        $region58: #{tpu_custom_call.1} parent=55 // pred_check_branch
          %1278 = sbr.rel (%p1276) target = $region60
        $region59: #{tpu_custom_call.1} parent=55 // pred_region
          %s1279 = sand.u32 %s142, 1
          %s1280 = scalar_lea.sflag [#allocation4], %s1279
          %s1281 = sand.u32 %s142, 1
          %s1282 = smul.addr %s1281, 64
          %s1283 = scalar_lea.vmem [#allocation7], %s1282
          %1284 = dma.done %s1280, 1024
        $region60: #{tpu_custom_call.1} parent=55 // pred_fallthru
          _
      $region56: #{tpu_custom_call.1} parent=5 // pred_fallthru
        _
    $region6: #{tpu_custom_call.1} parent=1 // loop_footer
      %s22 = sadd.s32 1, %s18
    $region7: #{tpu_custom_call.1} parent=1 // loop_footer_branch
      %17 = sbr.rel target = $region3
    $region8: #{tpu_custom_call.1} parent=1 // loop_exit
      _
    %1285 = vsyncpa [#allocation3], 1
    %s1286 = scalar_lea.sflag [#allocation3], 1
    %1287 = vsyncpa %s1286, 1
    %1288 = vsyncpa [#allocation4], 1
    %s1289 = scalar_lea.sflag [#allocation4], 1
    %1290 = vsyncpa %s1289, 1
    %1291 = vsyncpa [#allocation5], 1
    %s1292 = scalar_lea.sflag [#allocation5], 1
    %1293 = vsyncpa %s1292, 1

</llo_original>
